<compile_context>
chip_gen: v7x
topology: tpu7x:2x2x1
jax: 0.10.0
libtpu: 0.0.40
codegen_flags: <defaults>
</compile_context>

<pallas_src>
import functools

import jax
import jax.numpy as jnp
from jax.experimental import pallas as pl
from jax.experimental.pallas import tpu as pltpu


_LANE = 128               # lane tile width
_UNROLL = 8               # inner unroll factor of the fori_loop recurrence
_STATIC_UNROLL_MAX = 32   # chunks up to this many steps are fully unrolled


def _cdiv(a, b):
    return -(-a // b)


def _round_up(v, m):
    return ((v + m - 1) // m) * m


def _ligru_decoder_kernel(
    x_ref,    # (t_chunk, b_blk, I)        time-major input chunk (compute dtype)
    wx_ref,   # (I, 2*Hp)                  fused+padded [x2z | x2h] weights
    bx_ref,   # (1, 2*Hp)  f32             fused+padded [b_z | b_h] biases
    wh_ref,   # (Hp, 2*Hp)                 fused+padded [h2z | h2h] recurrent weights
    wfc_ref,  # (Hp, O)                    final projection weight (rows >= H are 0)
    bfc_ref,  # (1, O)     f32
    out_ref,  # (b_blk, O) f32
    h_ref,    # VMEM scratch (b_blk, Hp) f32: hidden state carried across chunks
    u_ref,    # VMEM scratch (t_chunk*b_blk, 2*Hp) f32: per-chunk input projection
    *, hp, b_blk, t_chunk, t_total,
):
    # Grid invariant (do NOT change): axis 0 = batch blocks ("parallel"),
    # axis 1 = time chunks ("arbitrary", innermost / fastest varying).
    # The hidden-state carry in h_ref relies on each batch block seeing its
    # time chunks in order on one core, with the c == 0 reset below.  The
    # output block index must stay constant in c (written only on last chunk).
    c = pl.program_id(1)
    i_sz = x_ref.shape[-1]
    ragged = (t_total % t_chunk) != 0

    @pl.when(c == 0)
    def _init():
        h_ref[...] = jnp.zeros_like(h_ref)

    # ---- hoisted input projection for the whole chunk -----------------------
    # One tall MXU matmul, sub-blocked to ~256 rows so intermediates stay small;
    # biases folded in here; results streamed to the u scratch so the serial
    # recurrence never holds the full chunk slab live in vregs.
    bx = bx_ref[...]
    tp = min(t_chunk, max(1, 256 // b_blk))
    for t0 in range(0, t_chunk, tp):
        ts = min(tp, t_chunk - t0)
        xb = x_ref[pl.ds(t0, ts), :, :].reshape(ts * b_blk, i_sz)
        u_ref[pl.ds(t0 * b_blk, ts * b_blk), :] = (
            jnp.dot(xb, wx_ref[...], preferred_element_type=jnp.float32) + bx
        )

    # ---- serial recurrence over the chunk -----------------------------------
    rdt = wh_ref.dtype   # MXU input dtype (bf16 on v6e/v7x path, f32 otherwise)

    def step(h, row_off, t_in_chunk):
        u_t = u_ref[pl.ds(row_off, b_blk), :]                       # (b, 2Hp) f32
        g = u_t + jnp.dot(h.astype(rdt), wh_ref[...],
                          preferred_element_type=jnp.float32)
        z = jax.nn.sigmoid(g[:, :hp])          # lane-aligned split (hp % 128 == 0)
        h_cand = jnp.maximum(g[:, hp:], 0.0)
        h_new = (1.0 - z) * h + z * h_cand     # elementwise stays f32 (v5e-safe)
        if ragged:
            # mask out padded timesteps of the (possibly partial) last chunk
            h_new = jnp.where(c * t_chunk + t_in_chunk < t_total, h_new, h)
        return h_new

    h = h_ref[...]
    if t_chunk <= _STATIC_UNROLL_MAX:
        for tt in range(t_chunk):              # fully unrolled, static offsets
            h = step(h, tt * b_blk, tt)
    else:
        assert t_chunk % _UNROLL == 0          # guaranteed by the wrapper

        def outer(i, h):
            base_t = i * _UNROLL
            for uu in range(_UNROLL):          # partial unroll inside fori_loop
                row = pl.multiple_of((base_t + uu) * b_blk, 8)
                h = step(h, row, base_t + uu)
            return h

        h = jax.lax.fori_loop(0, t_chunk // _UNROLL, outer, h)

    h_ref[...] = h

    # ---- final fc projection only after the last time chunk -----------------
    @pl.when(c == pl.num_programs(1) - 1)
    def _finish():
        out_ref[...] = (
            jnp.dot(h_ref[...].astype(wfc_ref.dtype), wfc_ref[...],
                    preferred_element_type=jnp.float32)
            + bfc_ref[...]
        ).astype(out_ref.dtype)


def _vmem_bytes_estimate(b_block, i_sz, hp, o_sz, x_bytes, w_bytes):
    """(fixed_bytes, per_timestep_bytes) of the pallas_call VMEM footprint."""
    fixed = (
        2 * i_sz * 2 * hp * w_bytes      # wx   (double-buffered by default)
        + 2 * 2 * hp * 4                 # bx
        + 2 * hp * 2 * hp * w_bytes      # wh
        + 2 * hp * o_sz * w_bytes        # wfc
        + 2 * o_sz * 4                   # bfc
        + 2 * b_block * o_sz * 4         # out
        + b_block * hp * 4               # h scratch
    )
    per_t = 2 * b_block * i_sz * x_bytes + b_block * 2 * hp * 4   # x (2x) + u
    return fixed, per_t


def _vmem_budget_bytes():
    # Re-derived per generation: 128 MiB physical on v5e/v6e, 64 MiB on v7x.
    try:
        cap = int(pltpu.get_tpu_info().vmem_capacity_bytes)
    except Exception:
        cap = 64 << 20                       # conservative (v7x per-core) fallback
    return max(16 << 20, cap * 7 // 10)      # leave headroom for compiler scratch


def ligru_decoder(x, params, *, compute_dtype=jnp.float32, t_chunk=None,
                  b_block=None):
    """x: (B, T, I).  Returns (B, O) float32.

    compute_dtype controls the MXU input dtype (use jnp.bfloat16 on v6e/v7x);
    accumulation, the hidden state and all elementwise math stay float32.
    """
    B, T, I = map(int, x.shape)
    H = int(params["whz"].shape[0])
    O = int(params["wfc"].shape[1])

    x_bytes = jnp.dtype(compute_dtype).itemsize
    w_bytes = x_bytes
    pack = 16 if x_bytes == 2 else 8         # sublane pack of the x-chunk dtype

    # Pad hidden size to a lane-aligned width.  Padded lanes of h stay exactly
    # zero: their weights/biases are zero, so z_pad = 0.5, h_cand_pad = 0 and
    # h_pad' = 0.5 * h_pad = 0 forever; the padded wfc rows are zero anyway.
    Hp = _round_up(H, _LANE)

    # ---- batch tiling --------------------------------------------------------
    if b_block is None:
        b8 = _round_up(B, pack)
        nb = _cdiv(b8, 256)                  # blocks of at most 256 MXU rows
        b_block = _round_up(_cdiv(b8, nb), pack)
        if nb == 1 and b_block >= 2 * _LANE:
            # keep >= 2 batch blocks so the "parallel" axis can shard across
            # TensorCores (v7x megacore) while each block still fills >= 128
            # MXU rows; for smaller batches prioritize MXU row fill (nb == 1).
            b_block = _round_up(_cdiv(b_block, 2), pack)
    else:
        b_block = _round_up(int(b_block), pack)
    B_pad = _round_up(B, b_block)
    nb = B_pad // b_block

    # ---- time chunking (VMEM-budget driven, never degrades to 1 for prime T) -
    budget = _vmem_budget_bytes()
    fixed, per_t = _vmem_bytes_estimate(b_block, I, Hp, O, x_bytes, w_bytes)
    if t_chunk is None:
        avail = budget - fixed
        t_cap_x = max(1, (8 << 20) // max(1, 2 * b_block * I * x_bytes))
        t_fit = avail // per_t if avail > per_t else 1
        t_chunk = max(1, min(T, int(t_fit), int(t_cap_x), 256))
    t_chunk = int(max(1, min(int(t_chunk), T)))
    if t_chunk > _STATIC_UNROLL_MAX:
        t_chunk = (t_chunk // _UNROLL) * _UNROLL   # kernel unrolls by _UNROLL
    nc = _cdiv(T, t_chunk)

    est = int(fixed + t_chunk * per_t)
    vmem_limit = int(min(budget + (8 << 20), max(32 << 20, est + est // 4)))

    # ---- fuse + pad weights once on the host (tiny, one-off) ----------------
    f32 = jnp.float32
    wx = jnp.zeros((I, 2 * Hp), f32)
    wx = wx.at[:, :H].set(params["wxz"]).at[:, Hp:Hp + H].set(params["wxh"])
    bx = jnp.zeros((1, 2 * Hp), f32)
    bx = bx.at[:, :H].set(params["bxz"]).at[:, Hp:Hp + H].set(params["bxh"])
    wh = jnp.zeros((Hp, 2 * Hp), f32)
    wh = wh.at[:H, :H].set(params["whz"]).at[:H, Hp:Hp + H].set(params["whh"])
    wfc = jnp.zeros((Hp, O), f32).at[:H, :].set(params["wfc"])
    bfc = params["bfc"].astype(f32)

    wx = wx.astype(compute_dtype)
    wh = wh.astype(compute_dtype)
    wfc = wfc.astype(compute_dtype)

    xc = x.astype(compute_dtype)
    if B_pad != B:
        xc = jnp.concatenate(
            [xc, jnp.zeros((B_pad - B, T, I), compute_dtype)], axis=0)
    # NOTE: this transpose is one extra full HBM read+write of x (see TODO at top).
    x_tm = jnp.transpose(xc, (1, 0, 2))          # (T, B_pad, I) time-major

    kernel = functools.partial(
        _ligru_decoder_kernel, hp=Hp, b_blk=b_block, t_chunk=t_chunk, t_total=T)

    grid_spec = pltpu.PrefetchScalarGridSpec(
        num_scalar_prefetch=0,
        grid=(nb, nc),                 # time chunks MUST stay the innermost axis
        in_specs=[
            pl.BlockSpec((t_chunk, b_block, I), lambda b, c: (c, b, 0)),
            pl.BlockSpec((I, 2 * Hp), lambda b, c: (0, 0)),
            pl.BlockSpec((1, 2 * Hp), lambda b, c: (0, 0)),
            pl.BlockSpec((Hp, 2 * Hp), lambda b, c: (0, 0)),
            pl.BlockSpec((Hp, O), lambda b, c: (0, 0)),
            pl.BlockSpec((1, O), lambda b, c: (0, 0)),
        ],
        # Output block index is constant in c (written only on the last chunk).
        out_specs=pl.BlockSpec((b_block, O), lambda b, c: (b, 0)),
        scratch_shapes=[
            pltpu.VMEM((b_block, Hp), jnp.float32),                 # hidden state
            pltpu.VMEM((t_chunk * b_block, 2 * Hp), jnp.float32),   # input proj u
        ],
    )

    out = pl.pallas_call(
        kernel,
        out_shape=jax.ShapeDtypeStruct((B_pad, O), jnp.float32),
        grid_spec=grid_spec,
        compiler_params=pltpu.CompilerParams(
            dimension_semantics=("parallel", "arbitrary"),
            vmem_limit_bytes=vmem_limit,
        ),
    )(x_tm, wx, bx, wh, wfc, bfc)
    return out[:B]


def init_params(key, input_size, hidden_size, output_size):
    """Deterministic synthetic params (Linear weights stored as (in, out))."""
    ks = jax.random.split(key, 8)
    scale = 0.1
    return {
        "wxz": scale * jax.random.normal(ks[0], (input_size, hidden_size), jnp.float32),
        "bxz": scale * jax.random.normal(ks[1], (1, hidden_size), jnp.float32),
        "whz": scale * jax.random.normal(ks[2], (hidden_size, hidden_size), jnp.float32),
        "wxh": scale * jax.random.normal(ks[3], (input_size, hidden_size), jnp.float32),
        "bxh": scale * jax.random.normal(ks[4], (1, hidden_size), jnp.float32),
        "whh": scale * jax.random.normal(ks[5], (hidden_size, hidden_size), jnp.float32),
        "wfc": scale * jax.random.normal(ks[6], (hidden_size, output_size), jnp.float32),
        "bfc": scale * jax.random.normal(ks[7], (1, output_size), jnp.float32),
    }


def ligru_decoder_ref(x, params):
    """Pure-JAX reference mirroring the PyTorch forward."""
    B, T, _ = x.shape
    H = params["whz"].shape[0]
    h = jnp.zeros((B, H), jnp.float32)
    for t in range(T):
        x_t = x[:, t, :]
        z = jax.nn.sigmoid(x_t @ params["wxz"] + params["bxz"] + h @ params["whz"])
        h_cand = jnp.maximum(
            x_t @ params["wxh"] + params["bxh"] + h @ params["whh"], 0.0)
        h = (1.0 - z) * h + z * h_cand
    return h @ params["wfc"] + params["bfc"]


if __name__ == "__main__":
    key = jax.random.PRNGKey(0)
    k1, k2, kp = jax.random.split(key, 3)

    # Small shapes consistent with the module: batch=8, seq=16, input=16,
    # hidden=32, output=8.
    B, T, I, H, O = 8, 16, 16, 32, 8
    params = init_params(kp, I, H, O)

    x = jax.random.normal(k1, (B, T, I), jnp.float32)
    ref = ligru_decoder_ref(x, params)

    # 1) default tiling, f32 MXU path (safe on every TPU generation)
    out = jax.block_until_ready(ligru_decoder(x, params))
    assert out.shape == (B, O)
    assert jnp.allclose(out, ref, atol=2e-4, rtol=2e-4), "f32 mismatch vs reference"

    # 2) multi-chunk / ragged time / several batch blocks: exercises the
    #    cross-chunk hidden-state carry, the fori_loop recurrence path and the
    #    partial-last-chunk masking.
    B2, T2 = 24, 88
    x2 = jax.random.normal(k2, (B2, T2, I), jnp.float32)
    ref2 = ligru_decoder_ref(x2, params)
    out2 = jax.block_until_ready(ligru_decoder(x2, params, t_chunk=40, b_block=8))
    assert out2.shape == (B2, O)
    assert jnp.allclose(out2, ref2, atol=2e-4, rtol=2e-4), "chunked mismatch"

    # 3) bf16 MXU-input path (recommended on v6e/v7x; accumulation stays f32)
    out_bf16 = jax.block_until_ready(
        ligru_decoder(x, params, compute_dtype=jnp.bfloat16))
    assert out_bf16.shape == (B, O)
    assert jnp.allclose(out_bf16, ref, atol=7.5e-2, rtol=7.5e-2), "bf16 mismatch"

    print("KERNEL_OK")
</pallas_src>

<mosaic_0001>
module attributes {stable_mosaic.version = 11 : i64} {
  func.func @_ligru_decoder_kernel(%arg0: i32, %arg1: i32, %arg2: memref<16x8x16xf32, #tpu.memory_space<vmem>>, %arg3: memref<16x256xf32, #tpu.memory_space<vmem>>, %arg4: memref<1x256xf32, #tpu.memory_space<vmem>>, %arg5: memref<128x256xf32, #tpu.memory_space<vmem>>, %arg6: memref<128x8xf32, #tpu.memory_space<vmem>>, %arg7: memref<1x8xf32, #tpu.memory_space<vmem>>, %arg8: memref<8x8xf32, #tpu.memory_space<vmem>>, %arg9: memref<8x128xf32, #tpu.memory_space<vmem>>, %arg10: memref<128x256xf32, #tpu.memory_space<vmem>>) attributes {dimension_semantics = [#tpu.dimension_semantics<parallel>, #tpu.dimension_semantics<arbitrary>], iteration_bounds = array<i64: 1, 1>, scalar_prefetch = 0 : i64, scratch_operands = 2 : i64, tpu.core_type = #tpu.core_type<tc>, window_params = [{transform_indices = @transform_0, window_bounds = array<i64: 16, 8, 16>}, {pipeline_mode = #tpu.pipeline_mode<synchronous>, transform_indices = @transform_1, window_bounds = array<i64: 16, 256>}, {pipeline_mode = #tpu.pipeline_mode<synchronous>, transform_indices = @transform_2, window_bounds = array<i64: 1, 256>}, {pipeline_mode = #tpu.pipeline_mode<synchronous>, transform_indices = @transform_3, window_bounds = array<i64: 128, 256>}, {pipeline_mode = #tpu.pipeline_mode<synchronous>, transform_indices = @transform_4, window_bounds = array<i64: 128, 8>}, {pipeline_mode = #tpu.pipeline_mode<synchronous>, transform_indices = @transform_5, window_bounds = array<i64: 1, 8>}, {transform_indices = @transform_6, window_bounds = array<i64: 8, 8>}]} {
    %c0_i32 = arith.constant 0 : i32
    %0 = arith.cmpi eq, %arg1, %c0_i32 : i32
    %1 = arith.extui %0 : i1 to i32
    %c0_i32_0 = arith.constant 0 : i32
    %2 = arith.cmpi ne, %1, %c0_i32_0 : i32
    scf.if %2 {
      %cst_128 = arith.constant 0.000000e+00 : f32
      %304 = vector.broadcast %cst_128 : f32 to vector<8x128xf32>
      %c0_129 = arith.constant 0 : index
      %c0_130 = arith.constant 0 : index
      %305 = vector.load %arg9[%c0_129, %c0_130] : memref<8x128xf32, #tpu.memory_space<vmem>>, vector<8x128xf32>
      tpu.vector_store %arg9[%c0_129, %c0_130], %304 {strides = array<i32>} : memref<8x128xf32, #tpu.memory_space<vmem>>, vector<8x128xf32>,
    } else {
    }
    %c0 = arith.constant 0 : index
    %c0_1 = arith.constant 0 : index
    %3 = vector.load %arg4[%c0, %c0_1] : memref<1x256xf32, #tpu.memory_space<vmem>>, vector<1x256xf32>
    %c0_2 = arith.constant 0 : index
    %c0_3 = arith.constant 0 : index
    %c0_4 = arith.constant 0 : index
    %4 = vector.load %arg2[%c0_2, %c0_3, %c0_4] : memref<16x8x16xf32, #tpu.memory_space<vmem>>, vector<16x8x16xf32>
    %5 = vector.shape_cast %4 : vector<16x8x16xf32> to vector<128x16xf32>
    %c0_5 = arith.constant 0 : index
    %c0_6 = arith.constant 0 : index
    %6 = vector.load %arg3[%c0_5, %c0_6] : memref<16x256xf32, #tpu.memory_space<vmem>>, vector<16x256xf32>
    %cst = arith.constant dense<0.000000e+00> : vector<128x256xf32>
    %7 = tpu.matmul %5, %6, %cst {dimension_numbers = #tpu.dot_dimension_numbers<[1], [0], [0], [1], [0, 0, 1, 1], [], []>} : vector<128x16xf32>, vector<16x256xf32>, vector<128x256xf32> -> vector<128x256xf32>
    %8 = vector.broadcast %3 : vector<1x256xf32> to vector<128x256xf32>
    %9 = arith.addf %7, %8 : vector<128x256xf32>
    %c0_7 = arith.constant 0 : index
    %c0_8 = arith.constant 0 : index
    %10 = vector.load %arg10[%c0_7, %c0_8] : memref<128x256xf32, #tpu.memory_space<vmem>>, vector<128x256xf32>
    tpu.vector_store %arg10[%c0_7, %c0_8], %9 {strides = array<i32>} : memref<128x256xf32, #tpu.memory_space<vmem>>, vector<128x256xf32>,
    %c0_9 = arith.constant 0 : index
    %c0_10 = arith.constant 0 : index
    %11 = vector.load %arg9[%c0_9, %c0_10] : memref<8x128xf32, #tpu.memory_space<vmem>>, vector<8x128xf32>
    %c0_11 = arith.constant 0 : index
    %c0_12 = arith.constant 0 : index
    %12 = vector.load %arg10[%c0_11, %c0_12] : memref<128x256xf32, #tpu.memory_space<vmem>>, vector<8x256xf32>
    %c0_13 = arith.constant 0 : index
    %c0_14 = arith.constant 0 : index
    %13 = vector.load %arg5[%c0_13, %c0_14] : memref<128x256xf32, #tpu.memory_space<vmem>>, vector<128x256xf32>
    %cst_15 = arith.constant dense<0.000000e+00> : vector<8x256xf32>
    %14 = tpu.matmul %11, %13, %cst_15 {dimension_numbers = #tpu.dot_dimension_numbers<[1], [0], [0], [1], [0, 0, 1, 1], [], []>} : vector<8x128xf32>, vector<128x256xf32>, vector<8x256xf32> -> vector<8x256xf32>
    %15 = arith.addf %12, %14 : vector<8x256xf32>
    %16 = vector.extract_strided_slice %15 {offsets = [0, 0], sizes = [8, 128], strides = [1, 1]} : vector<8x256xf32> to vector<8x128xf32>
    %17 = arith.negf %16 : vector<8x128xf32>
    %18 = math.exp %17 : vector<8x128xf32>
    %cst_16 = arith.constant 1.000000e+00 : f32
    %19 = vector.broadcast %cst_16 : f32 to vector<8x128xf32>
    %20 = arith.addf %19, %18 : vector<8x128xf32>
    %21 = arith.divf %19, %20 : vector<8x128xf32>
    %22 = vector.extract_strided_slice %15 {offsets = [0, 128], sizes = [8, 128], strides = [1, 1]} : vector<8x256xf32> to vector<8x128xf32>
    %cst_17 = arith.constant 0.000000e+00 : f32
    %23 = vector.broadcast %cst_17 : f32 to vector<8x128xf32>
    %24 = arith.maximumf %22, %23 : vector<8x128xf32>
    %cst_18 = arith.constant 1.000000e+00 : f32
    %25 = vector.broadcast %cst_18 : f32 to vector<8x128xf32>
    %26 = arith.subf %25, %21 : vector<8x128xf32>
    %27 = arith.mulf %26, %11 : vector<8x128xf32>
    %28 = arith.mulf %21, %24 : vector<8x128xf32>
    %29 = arith.addf %27, %28 : vector<8x128xf32>
    %c8 = arith.constant 8 : index
    %c0_19 = arith.constant 0 : index
    %30 = vector.load %arg10[%c8, %c0_19] : memref<128x256xf32, #tpu.memory_space<vmem>>, vector<8x256xf32>
    %c0_20 = arith.constant 0 : index
    %c0_21 = arith.constant 0 : index
    %31 = vector.load %arg5[%c0_20, %c0_21] : memref<128x256xf32, #tpu.memory_space<vmem>>, vector<128x256xf32>
    %cst_22 = arith.constant dense<0.000000e+00> : vector<8x256xf32>
    %32 = tpu.matmul %29, %31, %cst_22 {dimension_numbers = #tpu.dot_dimension_numbers<[1], [0], [0], [1], [0, 0, 1, 1], [], []>} : vector<8x128xf32>, vector<128x256xf32>, vector<8x256xf32> -> vector<8x256xf32>
    %33 = arith.addf %30, %32 : vector<8x256xf32>
    %34 = vector.extract_strided_slice %33 {offsets = [0, 0], sizes = [8, 128], strides = [1, 1]} : vector<8x256xf32> to vector<8x128xf32>
    %35 = arith.negf %34 : vector<8x128xf32>
    %36 = math.exp %35 : vector<8x128xf32>
    %cst_23 = arith.constant 1.000000e+00 : f32
    %37 = vector.broadcast %cst_23 : f32 to vector<8x128xf32>
    %38 = arith.addf %37, %36 : vector<8x128xf32>
    %39 = arith.divf %37, %38 : vector<8x128xf32>
    %40 = vector.extract_strided_slice %33 {offsets = [0, 128], sizes = [8, 128], strides = [1, 1]} : vector<8x256xf32> to vector<8x128xf32>
    %cst_24 = arith.constant 0.000000e+00 : f32
    %41 = vector.broadcast %cst_24 : f32 to vector<8x128xf32>
    %42 = arith.maximumf %40, %41 : vector<8x128xf32>
    %cst_25 = arith.constant 1.000000e+00 : f32
    %43 = vector.broadcast %cst_25 : f32 to vector<8x128xf32>
    %44 = arith.subf %43, %39 : vector<8x128xf32>
    %45 = arith.mulf %44, %29 : vector<8x128xf32>
    %46 = arith.mulf %39, %42 : vector<8x128xf32>
    %47 = arith.addf %45, %46 : vector<8x128xf32>
    %c16 = arith.constant 16 : index
    %c0_26 = arith.constant 0 : index
    %48 = vector.load %arg10[%c16, %c0_26] : memref<128x256xf32, #tpu.memory_space<vmem>>, vector<8x256xf32>
    %c0_27 = arith.constant 0 : index
    %c0_28 = arith.constant 0 : index
    %49 = vector.load %arg5[%c0_27, %c0_28] : memref<128x256xf32, #tpu.memory_space<vmem>>, vector<128x256xf32>
    %cst_29 = arith.constant dense<0.000000e+00> : vector<8x256xf32>
    %50 = tpu.matmul %47, %49, %cst_29 {dimension_numbers = #tpu.dot_dimension_numbers<[1], [0], [0], [1], [0, 0, 1, 1], [], []>} : vector<8x128xf32>, vector<128x256xf32>, vector<8x256xf32> -> vector<8x256xf32>
    %51 = arith.addf %48, %50 : vector<8x256xf32>
    %52 = vector.extract_strided_slice %51 {offsets = [0, 0], sizes = [8, 128], strides = [1, 1]} : vector<8x256xf32> to vector<8x128xf32>
    %53 = arith.negf %52 : vector<8x128xf32>
    %54 = math.exp %53 : vector<8x128xf32>
    %cst_30 = arith.constant 1.000000e+00 : f32
    %55 = vector.broadcast %cst_30 : f32 to vector<8x128xf32>
    %56 = arith.addf %55, %54 : vector<8x128xf32>
    %57 = arith.divf %55, %56 : vector<8x128xf32>
    %58 = vector.extract_strided_slice %51 {offsets = [0, 128], sizes = [8, 128], strides = [1, 1]} : vector<8x256xf32> to vector<8x128xf32>
    %cst_31 = arith.constant 0.000000e+00 : f32
    %59 = vector.broadcast %cst_31 : f32 to vector<8x128xf32>
    %60 = arith.maximumf %58, %59 : vector<8x128xf32>
    %cst_32 = arith.constant 1.000000e+00 : f32
    %61 = vector.broadcast %cst_32 : f32 to vector<8x128xf32>
    %62 = arith.subf %61, %57 : vector<8x128xf32>
    %63 = arith.mulf %62, %47 : vector<8x128xf32>
    %64 = arith.mulf %57, %60 : vector<8x128xf32>
    %65 = arith.addf %63, %64 : vector<8x128xf32>
    %c24 = arith.constant 24 : index
    %c0_33 = arith.constant 0 : index
    %66 = vector.load %arg10[%c24, %c0_33] : memref<128x256xf32, #tpu.memory_space<vmem>>, vector<8x256xf32>
    %c0_34 = arith.constant 0 : index
    %c0_35 = arith.constant 0 : index
    %67 = vector.load %arg5[%c0_34, %c0_35] : memref<128x256xf32, #tpu.memory_space<vmem>>, vector<128x256xf32>
    %cst_36 = arith.constant dense<0.000000e+00> : vector<8x256xf32>
    %68 = tpu.matmul %65, %67, %cst_36 {dimension_numbers = #tpu.dot_dimension_numbers<[1], [0], [0], [1], [0, 0, 1, 1], [], []>} : vector<8x128xf32>, vector<128x256xf32>, vector<8x256xf32> -> vector<8x256xf32>
    %69 = arith.addf %66, %68 : vector<8x256xf32>
    %70 = vector.extract_strided_slice %69 {offsets = [0, 0], sizes = [8, 128], strides = [1, 1]} : vector<8x256xf32> to vector<8x128xf32>
    %71 = arith.negf %70 : vector<8x128xf32>
    %72 = math.exp %71 : vector<8x128xf32>
    %cst_37 = arith.constant 1.000000e+00 : f32
    %73 = vector.broadcast %cst_37 : f32 to vector<8x128xf32>
    %74 = arith.addf %73, %72 : vector<8x128xf32>
    %75 = arith.divf %73, %74 : vector<8x128xf32>
    %76 = vector.extract_strided_slice %69 {offsets = [0, 128], sizes = [8, 128], strides = [1, 1]} : vector<8x256xf32> to vector<8x128xf32>
    %cst_38 = arith.constant 0.000000e+00 : f32
    %77 = vector.broadcast %cst_38 : f32 to vector<8x128xf32>
    %78 = arith.maximumf %76, %77 : vector<8x128xf32>
    %cst_39 = arith.constant 1.000000e+00 : f32
    %79 = vector.broadcast %cst_39 : f32 to vector<8x128xf32>
    %80 = arith.subf %79, %75 : vector<8x128xf32>
    %81 = arith.mulf %80, %65 : vector<8x128xf32>
    %82 = arith.mulf %75, %78 : vector<8x128xf32>
    %83 = arith.addf %81, %82 : vector<8x128xf32>
    %c32 = arith.constant 32 : index
    %c0_40 = arith.constant 0 : index
    %84 = vector.load %arg10[%c32, %c0_40] : memref<128x256xf32, #tpu.memory_space<vmem>>, vector<8x256xf32>
    %c0_41 = arith.constant 0 : index
    %c0_42 = arith.constant 0 : index
    %85 = vector.load %arg5[%c0_41, %c0_42] : memref<128x256xf32, #tpu.memory_space<vmem>>, vector<128x256xf32>
    %cst_43 = arith.constant dense<0.000000e+00> : vector<8x256xf32>
    %86 = tpu.matmul %83, %85, %cst_43 {dimension_numbers = #tpu.dot_dimension_numbers<[1], [0], [0], [1], [0, 0, 1, 1], [], []>} : vector<8x128xf32>, vector<128x256xf32>, vector<8x256xf32> -> vector<8x256xf32>
    %87 = arith.addf %84, %86 : vector<8x256xf32>
    %88 = vector.extract_strided_slice %87 {offsets = [0, 0], sizes = [8, 128], strides = [1, 1]} : vector<8x256xf32> to vector<8x128xf32>
    %89 = arith.negf %88 : vector<8x128xf32>
    %90 = math.exp %89 : vector<8x128xf32>
    %cst_44 = arith.constant 1.000000e+00 : f32
    %91 = vector.broadcast %cst_44 : f32 to vector<8x128xf32>
    %92 = arith.addf %91, %90 : vector<8x128xf32>
    %93 = arith.divf %91, %92 : vector<8x128xf32>
    %94 = vector.extract_strided_slice %87 {offsets = [0, 128], sizes = [8, 128], strides = [1, 1]} : vector<8x256xf32> to vector<8x128xf32>
    %cst_45 = arith.constant 0.000000e+00 : f32
    %95 = vector.broadcast %cst_45 : f32 to vector<8x128xf32>
    %96 = arith.maximumf %94, %95 : vector<8x128xf32>
    %cst_46 = arith.constant 1.000000e+00 : f32
    %97 = vector.broadcast %cst_46 : f32 to vector<8x128xf32>
    %98 = arith.subf %97, %93 : vector<8x128xf32>
    %99 = arith.mulf %98, %83 : vector<8x128xf32>
    %100 = arith.mulf %93, %96 : vector<8x128xf32>
    %101 = arith.addf %99, %100 : vector<8x128xf32>
    %c40 = arith.constant 40 : index
    %c0_47 = arith.constant 0 : index
    %102 = vector.load %arg10[%c40, %c0_47] : memref<128x256xf32, #tpu.memory_space<vmem>>, vector<8x256xf32>
    %c0_48 = arith.constant 0 : index
    %c0_49 = arith.constant 0 : index
    %103 = vector.load %arg5[%c0_48, %c0_49] : memref<128x256xf32, #tpu.memory_space<vmem>>, vector<128x256xf32>
    %cst_50 = arith.constant dense<0.000000e+00> : vector<8x256xf32>
    %104 = tpu.matmul %101, %103, %cst_50 {dimension_numbers = #tpu.dot_dimension_numbers<[1], [0], [0], [1], [0, 0, 1, 1], [], []>} : vector<8x128xf32>, vector<128x256xf32>, vector<8x256xf32> -> vector<8x256xf32>
    %105 = arith.addf %102, %104 : vector<8x256xf32>
    %106 = vector.extract_strided_slice %105 {offsets = [0, 0], sizes = [8, 128], strides = [1, 1]} : vector<8x256xf32> to vector<8x128xf32>
    %107 = arith.negf %106 : vector<8x128xf32>
    %108 = math.exp %107 : vector<8x128xf32>
    %cst_51 = arith.constant 1.000000e+00 : f32
    %109 = vector.broadcast %cst_51 : f32 to vector<8x128xf32>
    %110 = arith.addf %109, %108 : vector<8x128xf32>
    %111 = arith.divf %109, %110 : vector<8x128xf32>
    %112 = vector.extract_strided_slice %105 {offsets = [0, 128], sizes = [8, 128], strides = [1, 1]} : vector<8x256xf32> to vector<8x128xf32>
    %cst_52 = arith.constant 0.000000e+00 : f32
    %113 = vector.broadcast %cst_52 : f32 to vector<8x128xf32>
    %114 = arith.maximumf %112, %113 : vector<8x128xf32>
    %cst_53 = arith.constant 1.000000e+00 : f32
    %115 = vector.broadcast %cst_53 : f32 to vector<8x128xf32>
    %116 = arith.subf %115, %111 : vector<8x128xf32>
    %117 = arith.mulf %116, %101 : vector<8x128xf32>
    %118 = arith.mulf %111, %114 : vector<8x128xf32>
    %119 = arith.addf %117, %118 : vector<8x128xf32>
    %c48 = arith.constant 48 : index
    %c0_54 = arith.constant 0 : index
    %120 = vector.load %arg10[%c48, %c0_54] : memref<128x256xf32, #tpu.memory_space<vmem>>, vector<8x256xf32>
    %c0_55 = arith.constant 0 : index
    %c0_56 = arith.constant 0 : index
    %121 = vector.load %arg5[%c0_55, %c0_56] : memref<128x256xf32, #tpu.memory_space<vmem>>, vector<128x256xf32>
    %cst_57 = arith.constant dense<0.000000e+00> : vector<8x256xf32>
    %122 = tpu.matmul %119, %121, %cst_57 {dimension_numbers = #tpu.dot_dimension_numbers<[1], [0], [0], [1], [0, 0, 1, 1], [], []>} : vector<8x128xf32>, vector<128x256xf32>, vector<8x256xf32> -> vector<8x256xf32>
    %123 = arith.addf %120, %122 : vector<8x256xf32>
    %124 = vector.extract_strided_slice %123 {offsets = [0, 0], sizes = [8, 128], strides = [1, 1]} : vector<8x256xf32> to vector<8x128xf32>
    %125 = arith.negf %124 : vector<8x128xf32>
    %126 = math.exp %125 : vector<8x128xf32>
    %cst_58 = arith.constant 1.000000e+00 : f32
    %127 = vector.broadcast %cst_58 : f32 to vector<8x128xf32>
    %128 = arith.addf %127, %126 : vector<8x128xf32>
    %129 = arith.divf %127, %128 : vector<8x128xf32>
    %130 = vector.extract_strided_slice %123 {offsets = [0, 128], sizes = [8, 128], strides = [1, 1]} : vector<8x256xf32> to vector<8x128xf32>
    %cst_59 = arith.constant 0.000000e+00 : f32
    %131 = vector.broadcast %cst_59 : f32 to vector<8x128xf32>
    %132 = arith.maximumf %130, %131 : vector<8x128xf32>
    %cst_60 = arith.constant 1.000000e+00 : f32
    %133 = vector.broadcast %cst_60 : f32 to vector<8x128xf32>
    %134 = arith.subf %133, %129 : vector<8x128xf32>
    %135 = arith.mulf %134, %119 : vector<8x128xf32>
    %136 = arith.mulf %129, %132 : vector<8x128xf32>
    %137 = arith.addf %135, %136 : vector<8x128xf32>
    %c56 = arith.constant 56 : index
    %c0_61 = arith.constant 0 : index
    %138 = vector.load %arg10[%c56, %c0_61] : memref<128x256xf32, #tpu.memory_space<vmem>>, vector<8x256xf32>
    %c0_62 = arith.constant 0 : index
    %c0_63 = arith.constant 0 : index
    %139 = vector.load %arg5[%c0_62, %c0_63] : memref<128x256xf32, #tpu.memory_space<vmem>>, vector<128x256xf32>
    %cst_64 = arith.constant dense<0.000000e+00> : vector<8x256xf32>
    %140 = tpu.matmul %137, %139, %cst_64 {dimension_numbers = #tpu.dot_dimension_numbers<[1], [0], [0], [1], [0, 0, 1, 1], [], []>} : vector<8x128xf32>, vector<128x256xf32>, vector<8x256xf32> -> vector<8x256xf32>
    %141 = arith.addf %138, %140 : vector<8x256xf32>
    %142 = vector.extract_strided_slice %141 {offsets = [0, 0], sizes = [8, 128], strides = [1, 1]} : vector<8x256xf32> to vector<8x128xf32>
    %143 = arith.negf %142 : vector<8x128xf32>
    %144 = math.exp %143 : vector<8x128xf32>
    %cst_65 = arith.constant 1.000000e+00 : f32
    %145 = vector.broadcast %cst_65 : f32 to vector<8x128xf32>
    %146 = arith.addf %145, %144 : vector<8x128xf32>
    %147 = arith.divf %145, %146 : vector<8x128xf32>
    %148 = vector.extract_strided_slice %141 {offsets = [0, 128], sizes = [8, 128], strides = [1, 1]} : vector<8x256xf32> to vector<8x128xf32>
    %cst_66 = arith.constant 0.000000e+00 : f32
    %149 = vector.broadcast %cst_66 : f32 to vector<8x128xf32>
    %150 = arith.maximumf %148, %149 : vector<8x128xf32>
    %cst_67 = arith.constant 1.000000e+00 : f32
    %151 = vector.broadcast %cst_67 : f32 to vector<8x128xf32>
    %152 = arith.subf %151, %147 : vector<8x128xf32>
    %153 = arith.mulf %152, %137 : vector<8x128xf32>
    %154 = arith.mulf %147, %150 : vector<8x128xf32>
    %155 = arith.addf %153, %154 : vector<8x128xf32>
    %c64 = arith.constant 64 : index
    %c0_68 = arith.constant 0 : index
    %156 = vector.load %arg10[%c64, %c0_68] : memref<128x256xf32, #tpu.memory_space<vmem>>, vector<8x256xf32>
    %c0_69 = arith.constant 0 : index
    %c0_70 = arith.constant 0 : index
    %157 = vector.load %arg5[%c0_69, %c0_70] : memref<128x256xf32, #tpu.memory_space<vmem>>, vector<128x256xf32>
    %cst_71 = arith.constant dense<0.000000e+00> : vector<8x256xf32>
    %158 = tpu.matmul %155, %157, %cst_71 {dimension_numbers = #tpu.dot_dimension_numbers<[1], [0], [0], [1], [0, 0, 1, 1], [], []>} : vector<8x128xf32>, vector<128x256xf32>, vector<8x256xf32> -> vector<8x256xf32>
    %159 = arith.addf %156, %158 : vector<8x256xf32>
    %160 = vector.extract_strided_slice %159 {offsets = [0, 0], sizes = [8, 128], strides = [1, 1]} : vector<8x256xf32> to vector<8x128xf32>
    %161 = arith.negf %160 : vector<8x128xf32>
    %162 = math.exp %161 : vector<8x128xf32>
    %cst_72 = arith.constant 1.000000e+00 : f32
    %163 = vector.broadcast %cst_72 : f32 to vector<8x128xf32>
    %164 = arith.addf %163, %162 : vector<8x128xf32>
    %165 = arith.divf %163, %164 : vector<8x128xf32>
    %166 = vector.extract_strided_slice %159 {offsets = [0, 128], sizes = [8, 128], strides = [1, 1]} : vector<8x256xf32> to vector<8x128xf32>
    %cst_73 = arith.constant 0.000000e+00 : f32
    %167 = vector.broadcast %cst_73 : f32 to vector<8x128xf32>
    %168 = arith.maximumf %166, %167 : vector<8x128xf32>
    %cst_74 = arith.constant 1.000000e+00 : f32
    %169 = vector.broadcast %cst_74 : f32 to vector<8x128xf32>
    %170 = arith.subf %169, %165 : vector<8x128xf32>
    %171 = arith.mulf %170, %155 : vector<8x128xf32>
    %172 = arith.mulf %165, %168 : vector<8x128xf32>
    %173 = arith.addf %171, %172 : vector<8x128xf32>
    %c72 = arith.constant 72 : index
    %c0_75 = arith.constant 0 : index
    %174 = vector.load %arg10[%c72, %c0_75] : memref<128x256xf32, #tpu.memory_space<vmem>>, vector<8x256xf32>
    %c0_76 = arith.constant 0 : index
    %c0_77 = arith.constant 0 : index
    %175 = vector.load %arg5[%c0_76, %c0_77] : memref<128x256xf32, #tpu.memory_space<vmem>>, vector<128x256xf32>
    %cst_78 = arith.constant dense<0.000000e+00> : vector<8x256xf32>
    %176 = tpu.matmul %173, %175, %cst_78 {dimension_numbers = #tpu.dot_dimension_numbers<[1], [0], [0], [1], [0, 0, 1, 1], [], []>} : vector<8x128xf32>, vector<128x256xf32>, vector<8x256xf32> -> vector<8x256xf32>
    %177 = arith.addf %174, %176 : vector<8x256xf32>
    %178 = vector.extract_strided_slice %177 {offsets = [0, 0], sizes = [8, 128], strides = [1, 1]} : vector<8x256xf32> to vector<8x128xf32>
    %179 = arith.negf %178 : vector<8x128xf32>
    %180 = math.exp %179 : vector<8x128xf32>
    %cst_79 = arith.constant 1.000000e+00 : f32
    %181 = vector.broadcast %cst_79 : f32 to vector<8x128xf32>
    %182 = arith.addf %181, %180 : vector<8x128xf32>
    %183 = arith.divf %181, %182 : vector<8x128xf32>
    %184 = vector.extract_strided_slice %177 {offsets = [0, 128], sizes = [8, 128], strides = [1, 1]} : vector<8x256xf32> to vector<8x128xf32>
    %cst_80 = arith.constant 0.000000e+00 : f32
    %185 = vector.broadcast %cst_80 : f32 to vector<8x128xf32>
    %186 = arith.maximumf %184, %185 : vector<8x128xf32>
    %cst_81 = arith.constant 1.000000e+00 : f32
    %187 = vector.broadcast %cst_81 : f32 to vector<8x128xf32>
    %188 = arith.subf %187, %183 : vector<8x128xf32>
    %189 = arith.mulf %188, %173 : vector<8x128xf32>
    %190 = arith.mulf %183, %186 : vector<8x128xf32>
    %191 = arith.addf %189, %190 : vector<8x128xf32>
    %c80 = arith.constant 80 : index
    %c0_82 = arith.constant 0 : index
    %192 = vector.load %arg10[%c80, %c0_82] : memref<128x256xf32, #tpu.memory_space<vmem>>, vector<8x256xf32>
    %c0_83 = arith.constant 0 : index
    %c0_84 = arith.constant 0 : index
    %193 = vector.load %arg5[%c0_83, %c0_84] : memref<128x256xf32, #tpu.memory_space<vmem>>, vector<128x256xf32>
    %cst_85 = arith.constant dense<0.000000e+00> : vector<8x256xf32>
    %194 = tpu.matmul %191, %193, %cst_85 {dimension_numbers = #tpu.dot_dimension_numbers<[1], [0], [0], [1], [0, 0, 1, 1], [], []>} : vector<8x128xf32>, vector<128x256xf32>, vector<8x256xf32> -> vector<8x256xf32>
    %195 = arith.addf %192, %194 : vector<8x256xf32>
    %196 = vector.extract_strided_slice %195 {offsets = [0, 0], sizes = [8, 128], strides = [1, 1]} : vector<8x256xf32> to vector<8x128xf32>
    %197 = arith.negf %196 : vector<8x128xf32>
    %198 = math.exp %197 : vector<8x128xf32>
    %cst_86 = arith.constant 1.000000e+00 : f32
    %199 = vector.broadcast %cst_86 : f32 to vector<8x128xf32>
    %200 = arith.addf %199, %198 : vector<8x128xf32>
    %201 = arith.divf %199, %200 : vector<8x128xf32>
    %202 = vector.extract_strided_slice %195 {offsets = [0, 128], sizes = [8, 128], strides = [1, 1]} : vector<8x256xf32> to vector<8x128xf32>
    %cst_87 = arith.constant 0.000000e+00 : f32
    %203 = vector.broadcast %cst_87 : f32 to vector<8x128xf32>
    %204 = arith.maximumf %202, %203 : vector<8x128xf32>
    %cst_88 = arith.constant 1.000000e+00 : f32
    %205 = vector.broadcast %cst_88 : f32 to vector<8x128xf32>
    %206 = arith.subf %205, %201 : vector<8x128xf32>
    %207 = arith.mulf %206, %191 : vector<8x128xf32>
    %208 = arith.mulf %201, %204 : vector<8x128xf32>
    %209 = arith.addf %207, %208 : vector<8x128xf32>
    %c88 = arith.constant 88 : index
    %c0_89 = arith.constant 0 : index
    %210 = vector.load %arg10[%c88, %c0_89] : memref<128x256xf32, #tpu.memory_space<vmem>>, vector<8x256xf32>
    %c0_90 = arith.constant 0 : index
    %c0_91 = arith.constant 0 : index
    %211 = vector.load %arg5[%c0_90, %c0_91] : memref<128x256xf32, #tpu.memory_space<vmem>>, vector<128x256xf32>
    %cst_92 = arith.constant dense<0.000000e+00> : vector<8x256xf32>
    %212 = tpu.matmul %209, %211, %cst_92 {dimension_numbers = #tpu.dot_dimension_numbers<[1], [0], [0], [1], [0, 0, 1, 1], [], []>} : vector<8x128xf32>, vector<128x256xf32>, vector<8x256xf32> -> vector<8x256xf32>
    %213 = arith.addf %210, %212 : vector<8x256xf32>
    %214 = vector.extract_strided_slice %213 {offsets = [0, 0], sizes = [8, 128], strides = [1, 1]} : vector<8x256xf32> to vector<8x128xf32>
    %215 = arith.negf %214 : vector<8x128xf32>
    %216 = math.exp %215 : vector<8x128xf32>
    %cst_93 = arith.constant 1.000000e+00 : f32
    %217 = vector.broadcast %cst_93 : f32 to vector<8x128xf32>
    %218 = arith.addf %217, %216 : vector<8x128xf32>
    %219 = arith.divf %217, %218 : vector<8x128xf32>
    %220 = vector.extract_strided_slice %213 {offsets = [0, 128], sizes = [8, 128], strides = [1, 1]} : vector<8x256xf32> to vector<8x128xf32>
    %cst_94 = arith.constant 0.000000e+00 : f32
    %221 = vector.broadcast %cst_94 : f32 to vector<8x128xf32>
    %222 = arith.maximumf %220, %221 : vector<8x128xf32>
    %cst_95 = arith.constant 1.000000e+00 : f32
    %223 = vector.broadcast %cst_95 : f32 to vector<8x128xf32>
    %224 = arith.subf %223, %219 : vector<8x128xf32>
    %225 = arith.mulf %224, %209 : vector<8x128xf32>
    %226 = arith.mulf %219, %222 : vector<8x128xf32>
    %227 = arith.addf %225, %226 : vector<8x128xf32>
    %c96 = arith.constant 96 : index
    %c0_96 = arith.constant 0 : index
    %228 = vector.load %arg10[%c96, %c0_96] : memref<128x256xf32, #tpu.memory_space<vmem>>, vector<8x256xf32>
    %c0_97 = arith.constant 0 : index
    %c0_98 = arith.constant 0 : index
    %229 = vector.load %arg5[%c0_97, %c0_98] : memref<128x256xf32, #tpu.memory_space<vmem>>, vector<128x256xf32>
    %cst_99 = arith.constant dense<0.000000e+00> : vector<8x256xf32>
    %230 = tpu.matmul %227, %229, %cst_99 {dimension_numbers = #tpu.dot_dimension_numbers<[1], [0], [0], [1], [0, 0, 1, 1], [], []>} : vector<8x128xf32>, vector<128x256xf32>, vector<8x256xf32> -> vector<8x256xf32>
    %231 = arith.addf %228, %230 : vector<8x256xf32>
    %232 = vector.extract_strided_slice %231 {offsets = [0, 0], sizes = [8, 128], strides = [1, 1]} : vector<8x256xf32> to vector<8x128xf32>
    %233 = arith.negf %232 : vector<8x128xf32>
    %234 = math.exp %233 : vector<8x128xf32>
    %cst_100 = arith.constant 1.000000e+00 : f32
    %235 = vector.broadcast %cst_100 : f32 to vector<8x128xf32>
    %236 = arith.addf %235, %234 : vector<8x128xf32>
    %237 = arith.divf %235, %236 : vector<8x128xf32>
    %238 = vector.extract_strided_slice %231 {offsets = [0, 128], sizes = [8, 128], strides = [1, 1]} : vector<8x256xf32> to vector<8x128xf32>
    %cst_101 = arith.constant 0.000000e+00 : f32
    %239 = vector.broadcast %cst_101 : f32 to vector<8x128xf32>
    %240 = arith.maximumf %238, %239 : vector<8x128xf32>
    %cst_102 = arith.constant 1.000000e+00 : f32
    %241 = vector.broadcast %cst_102 : f32 to vector<8x128xf32>
    %242 = arith.subf %241, %237 : vector<8x128xf32>
    %243 = arith.mulf %242, %227 : vector<8x128xf32>
    %244 = arith.mulf %237, %240 : vector<8x128xf32>
    %245 = arith.addf %243, %244 : vector<8x128xf32>
    %c104 = arith.constant 104 : index
    %c0_103 = arith.constant 0 : index
    %246 = vector.load %arg10[%c104, %c0_103] : memref<128x256xf32, #tpu.memory_space<vmem>>, vector<8x256xf32>
    %c0_104 = arith.constant 0 : index
    %c0_105 = arith.constant 0 : index
    %247 = vector.load %arg5[%c0_104, %c0_105] : memref<128x256xf32, #tpu.memory_space<vmem>>, vector<128x256xf32>
    %cst_106 = arith.constant dense<0.000000e+00> : vector<8x256xf32>
    %248 = tpu.matmul %245, %247, %cst_106 {dimension_numbers = #tpu.dot_dimension_numbers<[1], [0], [0], [1], [0, 0, 1, 1], [], []>} : vector<8x128xf32>, vector<128x256xf32>, vector<8x256xf32> -> vector<8x256xf32>
    %249 = arith.addf %246, %248 : vector<8x256xf32>
    %250 = vector.extract_strided_slice %249 {offsets = [0, 0], sizes = [8, 128], strides = [1, 1]} : vector<8x256xf32> to vector<8x128xf32>
    %251 = arith.negf %250 : vector<8x128xf32>
    %252 = math.exp %251 : vector<8x128xf32>
    %cst_107 = arith.constant 1.000000e+00 : f32
    %253 = vector.broadcast %cst_107 : f32 to vector<8x128xf32>
    %254 = arith.addf %253, %252 : vector<8x128xf32>
    %255 = arith.divf %253, %254 : vector<8x128xf32>
    %256 = vector.extract_strided_slice %249 {offsets = [0, 128], sizes = [8, 128], strides = [1, 1]} : vector<8x256xf32> to vector<8x128xf32>
    %cst_108 = arith.constant 0.000000e+00 : f32
    %257 = vector.broadcast %cst_108 : f32 to vector<8x128xf32>
    %258 = arith.maximumf %256, %257 : vector<8x128xf32>
    %cst_109 = arith.constant 1.000000e+00 : f32
    %259 = vector.broadcast %cst_109 : f32 to vector<8x128xf32>
    %260 = arith.subf %259, %255 : vector<8x128xf32>
    %261 = arith.mulf %260, %245 : vector<8x128xf32>
    %262 = arith.mulf %255, %258 : vector<8x128xf32>
    %263 = arith.addf %261, %262 : vector<8x128xf32>
    %c112 = arith.constant 112 : index
    %c0_110 = arith.constant 0 : index
    %264 = vector.load %arg10[%c112, %c0_110] : memref<128x256xf32, #tpu.memory_space<vmem>>, vector<8x256xf32>
    %c0_111 = arith.constant 0 : index
    %c0_112 = arith.constant 0 : index
    %265 = vector.load %arg5[%c0_111, %c0_112] : memref<128x256xf32, #tpu.memory_space<vmem>>, vector<128x256xf32>
    %cst_113 = arith.constant dense<0.000000e+00> : vector<8x256xf32>
    %266 = tpu.matmul %263, %265, %cst_113 {dimension_numbers = #tpu.dot_dimension_numbers<[1], [0], [0], [1], [0, 0, 1, 1], [], []>} : vector<8x128xf32>, vector<128x256xf32>, vector<8x256xf32> -> vector<8x256xf32>
    %267 = arith.addf %264, %266 : vector<8x256xf32>
    %268 = vector.extract_strided_slice %267 {offsets = [0, 0], sizes = [8, 128], strides = [1, 1]} : vector<8x256xf32> to vector<8x128xf32>
    %269 = arith.negf %268 : vector<8x128xf32>
    %270 = math.exp %269 : vector<8x128xf32>
    %cst_114 = arith.constant 1.000000e+00 : f32
    %271 = vector.broadcast %cst_114 : f32 to vector<8x128xf32>
    %272 = arith.addf %271, %270 : vector<8x128xf32>
    %273 = arith.divf %271, %272 : vector<8x128xf32>
    %274 = vector.extract_strided_slice %267 {offsets = [0, 128], sizes = [8, 128], strides = [1, 1]} : vector<8x256xf32> to vector<8x128xf32>
    %cst_115 = arith.constant 0.000000e+00 : f32
    %275 = vector.broadcast %cst_115 : f32 to vector<8x128xf32>
    %276 = arith.maximumf %274, %275 : vector<8x128xf32>
    %cst_116 = arith.constant 1.000000e+00 : f32
    %277 = vector.broadcast %cst_116 : f32 to vector<8x128xf32>
    %278 = arith.subf %277, %273 : vector<8x128xf32>
    %279 = arith.mulf %278, %263 : vector<8x128xf32>
    %280 = arith.mulf %273, %276 : vector<8x128xf32>
    %281 = arith.addf %279, %280 : vector<8x128xf32>
    %c120 = arith.constant 120 : index
    %c0_117 = arith.constant 0 : index
    %282 = vector.load %arg10[%c120, %c0_117] : memref<128x256xf32, #tpu.memory_space<vmem>>, vector<8x256xf32>
    %c0_118 = arith.constant 0 : index
    %c0_119 = arith.constant 0 : index
    %283 = vector.load %arg5[%c0_118, %c0_119] : memref<128x256xf32, #tpu.memory_space<vmem>>, vector<128x256xf32>
    %cst_120 = arith.constant dense<0.000000e+00> : vector<8x256xf32>
    %284 = tpu.matmul %281, %283, %cst_120 {dimension_numbers = #tpu.dot_dimension_numbers<[1], [0], [0], [1], [0, 0, 1, 1], [], []>} : vector<8x128xf32>, vector<128x256xf32>, vector<8x256xf32> -> vector<8x256xf32>
    %285 = arith.addf %282, %284 : vector<8x256xf32>
    %286 = vector.extract_strided_slice %285 {offsets = [0, 0], sizes = [8, 128], strides = [1, 1]} : vector<8x256xf32> to vector<8x128xf32>
    %287 = arith.negf %286 : vector<8x128xf32>
    %288 = math.exp %287 : vector<8x128xf32>
    %cst_121 = arith.constant 1.000000e+00 : f32
    %289 = vector.broadcast %cst_121 : f32 to vector<8x128xf32>
    %290 = arith.addf %289, %288 : vector<8x128xf32>
    %291 = arith.divf %289, %290 : vector<8x128xf32>
    %292 = vector.extract_strided_slice %285 {offsets = [0, 128], sizes = [8, 128], strides = [1, 1]} : vector<8x256xf32> to vector<8x128xf32>
    %cst_122 = arith.constant 0.000000e+00 : f32
    %293 = vector.broadcast %cst_122 : f32 to vector<8x128xf32>
    %294 = arith.maximumf %292, %293 : vector<8x128xf32>
    %cst_123 = arith.constant 1.000000e+00 : f32
    %295 = vector.broadcast %cst_123 : f32 to vector<8x128xf32>
    %296 = arith.subf %295, %291 : vector<8x128xf32>
    %297 = arith.mulf %296, %281 : vector<8x128xf32>
    %298 = arith.mulf %291, %294 : vector<8x128xf32>
    %299 = arith.addf %297, %298 : vector<8x128xf32>
    %c0_124 = arith.constant 0 : index
    %c0_125 = arith.constant 0 : index
    %300 = vector.load %arg9[%c0_124, %c0_125] : memref<8x128xf32, #tpu.memory_space<vmem>>, vector<8x128xf32>
    tpu.vector_store %arg9[%c0_124, %c0_125], %299 {strides = array<i32>} : memref<8x128xf32, #tpu.memory_space<vmem>>, vector<8x128xf32>,
    %c0_i32_126 = arith.constant 0 : i32
    %301 = arith.cmpi eq, %arg1, %c0_i32_126 : i32
    %302 = arith.extui %301 : i1 to i32
    %c0_i32_127 = arith.constant 0 : i32
    %303 = arith.cmpi ne, %302, %c0_i32_127 : i32
    scf.if %303 {
      %c0_128 = arith.constant 0 : index
      %c0_129 = arith.constant 0 : index
      %304 = vector.load %arg9[%c0_128, %c0_129] : memref<8x128xf32, #tpu.memory_space<vmem>>, vector<8x128xf32>
      %c0_130 = arith.constant 0 : index
      %c0_131 = arith.constant 0 : index
      %305 = vector.load %arg6[%c0_130, %c0_131] : memref<128x8xf32, #tpu.memory_space<vmem>>, vector<128x8xf32>
      %cst_132 = arith.constant dense<0.000000e+00> : vector<8x8xf32>
      %306 = tpu.matmul %304, %305, %cst_132 {dimension_numbers = #tpu.dot_dimension_numbers<[1], [0], [0], [1], [0, 0, 1, 1], [], []>} : vector<8x128xf32>, vector<128x8xf32>, vector<8x8xf32> -> vector<8x8xf32>
      %c0_133 = arith.constant 0 : index
      %c0_134 = arith.constant 0 : index
      %307 = vector.load %arg7[%c0_133, %c0_134] : memref<1x8xf32, #tpu.memory_space<vmem>>, vector<1x8xf32>
      %308 = vector.broadcast %307 : vector<1x8xf32> to vector<8x8xf32>
      %309 = arith.addf %306, %308 : vector<8x8xf32>
      %c0_135 = arith.constant 0 : index
      %c0_136 = arith.constant 0 : index
      %310 = vector.load %arg8[%c0_135, %c0_136] : memref<8x8xf32, #tpu.memory_space<vmem>>, vector<8x8xf32>
      tpu.vector_store %arg8[%c0_135, %c0_136], %309 {strides = array<i32>} : memref<8x8xf32, #tpu.memory_space<vmem>>, vector<8x8xf32>,
    } else {
    }
    return
  }
  func.func @transform_0(%arg0: i32, %arg1: i32) -> (i32, i32, i32) {
    %c0_i32 = arith.constant 0 : i32
    %c0_i32_0 = arith.constant 0 : i32
    return %arg1, %arg0, %c0_i32 : i32, i32, i32
  }
  func.func @transform_1(%arg0: i32, %arg1: i32) -> (i32, i32) {
    %c0_i32 = arith.constant 0 : i32
    %c0_i32_0 = arith.constant 0 : i32
    %c0_i32_1 = arith.constant 0 : i32
    return %c0_i32, %c0_i32_0 : i32, i32
  }
  func.func @transform_2(%arg0: i32, %arg1: i32) -> (i32, i32) {
    %c0_i32 = arith.constant 0 : i32
    %c0_i32_0 = arith.constant 0 : i32
    %c0_i32_1 = arith.constant 0 : i32
    return %c0_i32, %c0_i32_0 : i32, i32
  }
  func.func @transform_3(%arg0: i32, %arg1: i32) -> (i32, i32) {
    %c0_i32 = arith.constant 0 : i32
    %c0_i32_0 = arith.constant 0 : i32
    %c0_i32_1 = arith.constant 0 : i32
    return %c0_i32, %c0_i32_0 : i32, i32
  }
  func.func @transform_4(%arg0: i32, %arg1: i32) -> (i32, i32) {
    %c0_i32 = arith.constant 0 : i32
    %c0_i32_0 = arith.constant 0 : i32
    %c0_i32_1 = arith.constant 0 : i32
    return %c0_i32, %c0_i32_0 : i32, i32
  }
  func.func @transform_5(%arg0: i32, %arg1: i32) -> (i32, i32) {
    %c0_i32 = arith.constant 0 : i32
    %c0_i32_0 = arith.constant 0 : i32
    %c0_i32_1 = arith.constant 0 : i32
    return %c0_i32, %c0_i32_0 : i32, i32
  }
  func.func @transform_6(%arg0: i32, %arg1: i32) -> (i32, i32) {
    %c0_i32 = arith.constant 0 : i32
    %c0_i32_0 = arith.constant 0 : i32
    return %arg0, %c0_i32 : i32, i32
  }
}

</mosaic_0001>

<llo_original>
// kernel: tpu_custom_call.1
$region0: #{tpu_custom_call.1}
  #allocation0 [shape = 'u32[]', space=smem, size = 0x4, offset = 0x4, fixed_abs, tag = 'smem constant byte address 0x4 - core index']
  #allocation1 [shape = 'u32[144,128]{1,0:T(1,128)}', space=vmem, size = 0x12000, scoped, tag = 'internal scratch']
  #allocation2 [shape = 'f32[8,128]{1,0:T(8,128)}', space=vmem, size = 0x1000, scoped, tag = 'scratch operand']
  #allocation3 [shape = 'f32[128,256]{1,0:T(8,128)}', space=vmem, size = 0x20000, scoped, tag = 'scratch operand']
  %s0 = inlined_call_operand.vmem [shape: f32[16,8,16], index: 0, kind: input, shape index: {}]
  %s1 = inlined_call_operand.hbm [shape: f32[16,256], index: 1, kind: input, shape index: {}]
  %s2 = inlined_call_operand.vmem [shape: f32[1,256], index: 2, kind: input, shape index: {}]
  %s3 = inlined_call_operand.hbm [shape: f32[128,256], index: 3, kind: input, shape index: {}]
  %s4 = inlined_call_operand.vmem [shape: f32[128,8], index: 4, kind: input, shape index: {}]
  %s5 = inlined_call_operand.vmem [shape: f32[1,8], index: 5, kind: input, shape index: {}]
  %s6 = inlined_call_operand.hbm [shape: f32[8,8], index: 6, kind: output, shape index: {}]
  %s7 = sld [smem:[#allocation0]]
  $region50: #{tpu_custom_call.1} parent=0
    _
  %s9 = ssub.s32 1, %s7
  %s10 = scalar_select 0, %s9, %s7
  $region1: #{tpu_custom_call.1} parent=0
    #allocation4 [shape = 'u8[16384]{0}', space=vmem, size = 0x4000, scoped, tag = 'input window, operand 1, single buffered']
    #allocation5 [shape = 's32[1]{0}', space=sflag, size = 0x4, scoped, tag = 'scoped memory for tpu_custom_call.1']
    #allocation6 [shape = 's32[1]{0}', space=sflag, size = 0x4, scoped, tag = 'scoped memory for tpu_custom_call.1']
    #allocation7 [shape = 'u8[131072]{0}', space=vmem, size = 0x20000, scoped, tag = 'input window, operand 3, single buffered']
    #allocation8 [shape = 's32[1]{0}', space=sflag, size = 0x4, scoped, tag = 'scoped memory for tpu_custom_call.1']
    #allocation9 [shape = 'u8[4096]{0}', space=vmem, size = 0x1000, scoped, tag = 'output window, operand 0, single buffered']
    %11 = vsyncpa [#allocation5], 0
    %12 = vsyncpa [#allocation8], 0
    %13 = vsyncpa [#allocation6], 0
    // Predicated region
    $region2: #{tpu_custom_call.1} parent=1 // pred_check
      _
    $region3: #{tpu_custom_call.1} parent=1 // pred_check_branch
      %15 = sbr.rel (0) target = $region5
    $region4: #{tpu_custom_call.1} parent=1 // pred_region
      _
    $region5: #{tpu_custom_call.1} parent=1 // pred_fallthru
      _
    // Predicated region
    $region6: #{tpu_custom_call.1} parent=1 // pred_check
      _
    $region7: #{tpu_custom_call.1} parent=1 // pred_check_branch
      %17 = sbr.rel (0) target = $region9
    $region8: #{tpu_custom_call.1} parent=1 // pred_region
      %s19 = ssub.s32 512, 512
      %20 = vsyncadd [#allocation5], %s19
      %s21 = sshll.u32 [#allocation4], 4
      %s22 = int_to_ptr.vmem [resolvable:$true] %s21
      %27 = dma.hbm_to_vmem [thread:$0]  %s1, 512, %s22, [#allocation5], 256, 256, 16
    $region9: #{tpu_custom_call.1} parent=1 // pred_fallthru
      _
    // Predicated region
    $region10: #{tpu_custom_call.1} parent=1 // pred_check
      _
    $region11: #{tpu_custom_call.1} parent=1 // pred_check_branch
      %29 = sbr.rel (0) target = $region13
    $region12: #{tpu_custom_call.1} parent=1 // pred_region
      _
    $region13: #{tpu_custom_call.1} parent=1 // pred_fallthru
      _
    // Predicated region
    $region14: #{tpu_custom_call.1} parent=1 // pred_check
      _
    $region15: #{tpu_custom_call.1} parent=1 // pred_check_branch
      %31 = sbr.rel (0) target = $region17
    $region16: #{tpu_custom_call.1} parent=1 // pred_region
      %s33 = ssub.s32 4096, 4096
      %34 = vsyncadd [#allocation8], %s33
      %s35 = sshll.u32 [#allocation7], 4
      %s36 = int_to_ptr.vmem [resolvable:$true] %s35
      %41 = dma.hbm_to_vmem [thread:$0]  %s3, 4096, %s36, [#allocation8], 256, 256, 16
    $region17: #{tpu_custom_call.1} parent=1 // pred_fallthru
      _
    // Predicated region
    $region18: #{tpu_custom_call.1} parent=1 // pred_check
      _
    $region19: #{tpu_custom_call.1} parent=1 // pred_check_branch
      %43 = sbr.rel (0) target = $region21
    $region20: #{tpu_custom_call.1} parent=1 // pred_region
      _
    $region21: #{tpu_custom_call.1} parent=1 // pred_fallthru
      _
    // Predicated region
    $region22: #{tpu_custom_call.1} parent=1 // pred_check
      _
    $region23: #{tpu_custom_call.1} parent=1 // pred_check_branch
      %45 = sbr.rel (0) target = $region25
    $region24: #{tpu_custom_call.1} parent=1 // pred_region
      _
    $region25: #{tpu_custom_call.1} parent=1 // pred_fallthru
      _
    // Predicated region
    $region26: #{tpu_custom_call.1} parent=1 // pred_check
      _
    $region27: #{tpu_custom_call.1} parent=1 // pred_check_branch
      %47 = sbr.rel (0) target = $region29
    $region28: #{tpu_custom_call.1} parent=1 // pred_region
      %48 = dma.done [#allocation5], 512
    $region29: #{tpu_custom_call.1} parent=1 // pred_fallthru
      _
    // Predicated region
    $region30: #{tpu_custom_call.1} parent=1 // pred_check
      _
    $region31: #{tpu_custom_call.1} parent=1 // pred_check_branch
      %50 = sbr.rel (0) target = $region33
    $region32: #{tpu_custom_call.1} parent=1 // pred_region
      %51 = dma.done [#allocation8], 4096
    $region33: #{tpu_custom_call.1} parent=1 // pred_fallthru
      _
    %p52 = scmp.eq.s32.totalorder 0, 0
    // Predicated region
    $region34: #{tpu_custom_call.1} parent=1 // pred_check
      %p53 = pneg %p52
    $region35: #{tpu_custom_call.1} parent=1 // pred_check_branch
      %55 = sbr.rel (%p53) target = $region37
    $region36: #{tpu_custom_call.1} parent=1 // pred_region
      %56 = vst [vmem:[#allocation2] sm:$0xff] 0.0
    $region37: #{tpu_custom_call.1} parent=1 // pred_fallthru
      _
    %v57 = vld [vmem:[%s2] sm:$0x3]
    %v58 = vld [vmem:[%s0] sm:$0xff]
    %v59 = vld [vmem:[%s0 + $0x8] sm:$0xff]
    %v60 = vld [vmem:[%s0 + $0x10] sm:$0xff]
    %v61 = vld [vmem:[%s0 + $0x18] sm:$0xff]
    %v62 = vld [vmem:[%s0 + $0x20] sm:$0xff]
    %v63 = vld [vmem:[%s0 + $0x28] sm:$0xff]
    %v64 = vld [vmem:[%s0 + $0x30] sm:$0xff]
    %v65 = vld [vmem:[%s0 + $0x38] sm:$0xff]
    %v66 = vld [vmem:[%s0 + $0x40] sm:$0xff]
    %v67 = vld [vmem:[%s0 + $0x48] sm:$0xff]
    %v68 = vld [vmem:[%s0 + $0x50] sm:$0xff]
    %v69 = vld [vmem:[%s0 + $0x58] sm:$0xff]
    %v70 = vld [vmem:[%s0 + $0x60] sm:$0xff]
    %v71 = vld [vmem:[%s0 + $0x68] sm:$0xff]
    %v72 = vld [vmem:[%s0 + $0x70] sm:$0xff]
    %v73 = vld [vmem:[%s0 + $0x78] sm:$0xff]
    %v74 = vld [vmem:[#allocation4] sm:$0xff]
    %v75 = vld [vmem:[#allocation4 + $0x8] sm:$0xff]
    %v76 = vld [vmem:[#allocation4 + $0x10] sm:$0xff]
    %v77 = vld [vmem:[#allocation4 + $0x18] sm:$0xff]
    %v79 = vlaneseq
    %v80 = vshrl.u32 %v79, 7
    %v81 = vsub.s32 0, %v80
    %v82 = vrot.slane %v57, %v81
    %v83 = vlaneseq
    %v84 = vshrl.u32 %v83, 7
    %v85 = vsub.s32 1, %v84
    %v86 = vrot.slane %v57, %v85
    %vm89 = vcmask 130048
    %v91 = vsel %vm89, %v58, 0
    %v94 = vsel %vm89, %v59, 0
    %v97 = vsel %vm89, %v60, 0
    %v100 = vsel %vm89, %v61, 0
    %v103 = vsel %vm89, %v62, 0
    %v106 = vsel %vm89, %v63, 0
    %v109 = vsel %vm89, %v64, 0
    %v112 = vsel %vm89, %v65, 0
    %v115 = vsel %vm89, %v66, 0
    %v118 = vsel %vm89, %v67, 0
    %v121 = vsel %vm89, %v68, 0
    %v124 = vsel %vm89, %v69, 0
    %v127 = vsel %vm89, %v70, 0
    %v130 = vsel %vm89, %v71, 0
    %v133 = vsel %vm89, %v72, 0
    %v136 = vsel %vm89, %v73, 0
    %138 = vmatprep.subr.mxu0 %v75
    %139 = vmatpush1.msra.mxu0 %v74
    %140 = vmatprep.subr.mxu0 %v77
    %141 = vmatpush1.msra.mxu0 %v76
    %142 = vmatprep.subr.mxu0 0.0
    %143 = vmatpush1.msra.mxu0 0.0
    %144 = vmatprep.subr.mxu0 0.0
    %145 = vmatpush1.msra.mxu0 0.0
    %146 = vmatprep.subr.mxu0 0.0
    %147 = vmatpush1.msra.mxu0 0.0
    %148 = vmatprep.subr.mxu0 0.0
    %149 = vmatpush1.msra.mxu0 0.0
    %150 = vmatprep.subr.mxu0 0.0
    %151 = vmatpush1.msra.mxu0 0.0
    %152 = vmatprep.subr.mxu0 0.0
    %153 = vmatpush1.msra.mxu0 0.0
    %154 = vmatprep.subr.mxu0 0.0
    %155 = vmatpush1.msra.mxu0 0.0
    %156 = vmatprep.subr.mxu0 0.0
    %157 = vmatpush1.msra.mxu0 0.0
    %158 = vmatprep.subr.mxu0 0.0
    %159 = vmatpush1.msra.mxu0 0.0
    %160 = vmatprep.subr.mxu0 0.0
    %161 = vmatpush1.msra.mxu0 0.0
    %162 = vmatprep.subr.mxu0 0.0
    %163 = vmatpush1.msra.mxu0 0.0
    %164 = vmatprep.subr.mxu0 0.0
    %165 = vmatpush1.msra.mxu0 0.0
    %166 = vmatprep.subr.mxu0 0.0
    %167 = vmatpush1.msra.mxu0 0.0
    %168 = vmatprep.subr.mxu0 0.0
    %169 = vmatpush1.msra.mxu0 0.0
    %170 = vmatprep.subr.mxu0 0.0
    %171 = vmatpush1.msra.mxu0 0.0
    %172 = vmatprep.subr.mxu0 0.0
    %173 = vmatpush1.msra.mxu0 0.0
    %174 = vmatprep.subr.mxu0 0.0
    %175 = vmatpush1.msra.mxu0 0.0
    %176 = vmatprep.subr.mxu0 0.0
    %177 = vmatpush1.msra.mxu0 0.0
    %178 = vmatprep.subr.mxu0 0.0
    %179 = vmatpush1.msra.mxu0 0.0
    %180 = vmatprep.subr.mxu0 0.0
    %181 = vmatpush1.msra.mxu0 0.0
    %182 = vmatprep.subr.mxu0 0.0
    %183 = vmatpush1.msra.mxu0 0.0
    %184 = vmatprep.subr.mxu0 0.0
    %185 = vmatpush1.msra.mxu0 0.0
    %186 = vmatprep.subr.mxu0 0.0
    %187 = vmatpush1.msra.mxu0 0.0
    %188 = vmatprep.subr.mxu0 0.0
    %189 = vmatpush1.msra.mxu0 0.0
    %190 = vmatprep.subr.mxu0 0.0
    %191 = vmatpush1.msra.mxu0 0.0
    %192 = vmatprep.subr.mxu0 0.0
    %193 = vmatpush1.msra.mxu0 0.0
    %194 = vmatprep.subr.mxu0 0.0
    %195 = vmatpush1.msra.mxu0 0.0
    %196 = vmatprep.subr.mxu0 0.0
    %197 = vmatpush1.msra.mxu0 0.0
    %198 = vmatprep.subr.mxu0 0.0
    %199 = vmatpush1.msra.mxu0 0.0
    %200 = vmatprep.subr.mxu0 0.0
    %201 = vmatpush1.msra.mxu0 0.0
    %202 = vmatprep.mubr.f32.mxu0 0.0
    %203 = vmatmul.mubr.f32.gmra.mrb[0].mxu0 %v91
    %v204 = vpop.f32.mrb[0].mxu0
    %v205 = vadd.f32 %v82, %v204
    %v206 = vpop.f32.mrb[0].mxu0
    %v207 = vadd.f32 %v86, %v206
    %208 = vmatprep.mubr.f32.mxu0 0.0
    %209 = vmatmul.mubr.f32.gmra.mrb[0].mxu0 %v94
    %v210 = vpop.f32.mrb[0].mxu0
    %v211 = vadd.f32 %v82, %v210
    %v212 = vpop.f32.mrb[0].mxu0
    %v213 = vadd.f32 %v86, %v212
    %214 = vmatprep.mubr.f32.mxu0 0.0
    %215 = vmatmul.mubr.f32.gmra.mrb[0].mxu0 %v97
    %v216 = vpop.f32.mrb[0].mxu0
    %v217 = vadd.f32 %v82, %v216
    %v218 = vpop.f32.mrb[0].mxu0
    %v219 = vadd.f32 %v86, %v218
    %220 = vmatprep.mubr.f32.mxu0 0.0
    %221 = vmatmul.mubr.f32.gmra.mrb[0].mxu0 %v100
    %v222 = vpop.f32.mrb[0].mxu0
    %v223 = vadd.f32 %v82, %v222
    %v224 = vpop.f32.mrb[0].mxu0
    %v225 = vadd.f32 %v86, %v224
    %226 = vmatprep.mubr.f32.mxu0 0.0
    %227 = vmatmul.mubr.f32.gmra.mrb[0].mxu0 %v103
    %v228 = vpop.f32.mrb[0].mxu0
    %v229 = vadd.f32 %v82, %v228
    %v230 = vpop.f32.mrb[0].mxu0
    %v231 = vadd.f32 %v86, %v230
    %232 = vmatprep.mubr.f32.mxu0 0.0
    %233 = vmatmul.mubr.f32.gmra.mrb[0].mxu0 %v106
    %v234 = vpop.f32.mrb[0].mxu0
    %v235 = vadd.f32 %v82, %v234
    %v236 = vpop.f32.mrb[0].mxu0
    %v237 = vadd.f32 %v86, %v236
    %238 = vmatprep.mubr.f32.mxu0 0.0
    %239 = vmatmul.mubr.f32.gmra.mrb[0].mxu0 %v109
    %v240 = vpop.f32.mrb[0].mxu0
    %v241 = vadd.f32 %v82, %v240
    %v242 = vpop.f32.mrb[0].mxu0
    %v243 = vadd.f32 %v86, %v242
    %244 = vmatprep.mubr.f32.mxu0 0.0
    %245 = vmatmul.mubr.f32.gmra.mrb[0].mxu0 %v112
    %v246 = vpop.f32.mrb[0].mxu0
    %v247 = vadd.f32 %v82, %v246
    %v248 = vpop.f32.mrb[0].mxu0
    %v249 = vadd.f32 %v86, %v248
    %250 = vmatprep.mubr.f32.mxu0 0.0
    %251 = vmatmul.mubr.f32.gmra.mrb[0].mxu0 %v115
    %v252 = vpop.f32.mrb[0].mxu0
    %v253 = vadd.f32 %v82, %v252
    %v254 = vpop.f32.mrb[0].mxu0
    %v255 = vadd.f32 %v86, %v254
    %256 = vmatprep.mubr.f32.mxu0 0.0
    %257 = vmatmul.mubr.f32.gmra.mrb[0].mxu0 %v118
    %v258 = vpop.f32.mrb[0].mxu0
    %v259 = vadd.f32 %v82, %v258
    %v260 = vpop.f32.mrb[0].mxu0
    %v261 = vadd.f32 %v86, %v260
    %262 = vmatprep.mubr.f32.mxu0 0.0
    %263 = vmatmul.mubr.f32.gmra.mrb[0].mxu0 %v121
    %v264 = vpop.f32.mrb[0].mxu0
    %v265 = vadd.f32 %v82, %v264
    %v266 = vpop.f32.mrb[0].mxu0
    %v267 = vadd.f32 %v86, %v266
    %268 = vmatprep.mubr.f32.mxu0 0.0
    %269 = vmatmul.mubr.f32.gmra.mrb[0].mxu0 %v124
    %v270 = vpop.f32.mrb[0].mxu0
    %v271 = vadd.f32 %v82, %v270
    %v272 = vpop.f32.mrb[0].mxu0
    %v273 = vadd.f32 %v86, %v272
    %274 = vmatprep.mubr.f32.mxu0 0.0
    %275 = vmatmul.mubr.f32.gmra.mrb[0].mxu0 %v127
    %v276 = vpop.f32.mrb[0].mxu0
    %v277 = vadd.f32 %v82, %v276
    %v278 = vpop.f32.mrb[0].mxu0
    %v279 = vadd.f32 %v86, %v278
    %280 = vmatprep.mubr.f32.mxu0 0.0
    %281 = vmatmul.mubr.f32.gmra.mrb[0].mxu0 %v130
    %v282 = vpop.f32.mrb[0].mxu0
    %v283 = vadd.f32 %v82, %v282
    %v284 = vpop.f32.mrb[0].mxu0
    %v285 = vadd.f32 %v86, %v284
    %286 = vmatprep.mubr.f32.mxu0 0.0
    %287 = vmatmul.mubr.f32.gmra.mrb[0].mxu0 %v133
    %v288 = vpop.f32.mrb[0].mxu0
    %v289 = vadd.f32 %v82, %v288
    %v290 = vpop.f32.mrb[0].mxu0
    %v291 = vadd.f32 %v86, %v290
    %292 = vmatprep.mubr.f32.mxu0 0.0
    %293 = vmatmul.mubr.f32.gmra.mrb[0].mxu0 %v136
    %v294 = vpop.f32.mrb[0].mxu0
    %v295 = vadd.f32 %v82, %v294
    %v296 = vpop.f32.mrb[0].mxu0
    %v297 = vadd.f32 %v86, %v296
    %298 = vdwg.mxu0
    %299 = vst [vmem:[#allocation3] sm:$0xff] %v205
    %300 = vst [vmem:[#allocation3 + $0x8] sm:$0xff] %v207
    %301 = vst [vmem:[#allocation3 + $0x10] sm:$0xff] %v211
    %302 = vst [vmem:[#allocation3 + $0x18] sm:$0xff] %v213
    %303 = vst [vmem:[#allocation3 + $0x20] sm:$0xff] %v217
    %304 = vst [vmem:[#allocation3 + $0x28] sm:$0xff] %v219
    %305 = vst [vmem:[#allocation3 + $0x30] sm:$0xff] %v223
    %306 = vst [vmem:[#allocation3 + $0x38] sm:$0xff] %v225
    %307 = vst [vmem:[#allocation3 + $0x40] sm:$0xff] %v229
    %308 = vst [vmem:[#allocation3 + $0x48] sm:$0xff] %v231
    %309 = vst [vmem:[#allocation3 + $0x50] sm:$0xff] %v235
    %310 = vst [vmem:[#allocation3 + $0x58] sm:$0xff] %v237
    %311 = vst [vmem:[#allocation3 + $0x60] sm:$0xff] %v241
    %312 = vst [vmem:[#allocation3 + $0x68] sm:$0xff] %v243
    %313 = vst [vmem:[#allocation3 + $0x70] sm:$0xff] %v247
    %314 = vst [vmem:[#allocation3 + $0x78] sm:$0xff] %v249
    %315 = vst [vmem:[#allocation3 + $0x80] sm:$0xff] %v253
    %316 = vst [vmem:[#allocation3 + $0x88] sm:$0xff] %v255
    %317 = vst [vmem:[#allocation3 + $0x90] sm:$0xff] %v259
    %318 = vst [vmem:[#allocation3 + $0x98] sm:$0xff] %v261
    %319 = vst [vmem:[#allocation3 + $0xa0] sm:$0xff] %v265
    %320 = vst [vmem:[#allocation3 + $0xa8] sm:$0xff] %v267
    %321 = vst [vmem:[#allocation3 + $0xb0] sm:$0xff] %v271
    %322 = vst [vmem:[#allocation3 + $0xb8] sm:$0xff] %v273
    %323 = vst [vmem:[#allocation3 + $0xc0] sm:$0xff] %v277
    %324 = vst [vmem:[#allocation3 + $0xc8] sm:$0xff] %v279
    %325 = vst [vmem:[#allocation3 + $0xd0] sm:$0xff] %v283
    %326 = vst [vmem:[#allocation3 + $0xd8] sm:$0xff] %v285
    %327 = vst [vmem:[#allocation3 + $0xe0] sm:$0xff] %v289
    %328 = vst [vmem:[#allocation3 + $0xe8] sm:$0xff] %v291
    %329 = vst [vmem:[#allocation3 + $0xf0] sm:$0xff] %v295
    %330 = vst [vmem:[#allocation3 + $0xf8] sm:$0xff] %v297
    %v331 = vld [vmem:[#allocation2] sm:$0xff]
    %v332 = vld [vmem:[#allocation3] sm:$0xff]
    %v333 = vld [vmem:[#allocation3 + $0x8] sm:$0xff]
    %v334 = vld [vmem:[#allocation7] sm:$0xff]
    %v335 = vld [vmem:[#allocation7 + $0x8] sm:$0xff]
    %v336 = vld [vmem:[#allocation7 + $0x10] sm:$0xff]
    %v337 = vld [vmem:[#allocation7 + $0x18] sm:$0xff]
    %v338 = vld [vmem:[#allocation7 + $0x20] sm:$0xff]
    %v339 = vld [vmem:[#allocation7 + $0x28] sm:$0xff]
    %v340 = vld [vmem:[#allocation7 + $0x30] sm:$0xff]
    %v341 = vld [vmem:[#allocation7 + $0x38] sm:$0xff]
    %v342 = vld [vmem:[#allocation7 + $0x40] sm:$0xff]
    %v343 = vld [vmem:[#allocation7 + $0x48] sm:$0xff]
    %v344 = vld [vmem:[#allocation7 + $0x50] sm:$0xff]
    %v345 = vld [vmem:[#allocation7 + $0x58] sm:$0xff]
    %v346 = vld [vmem:[#allocation7 + $0x60] sm:$0xff]
    %v347 = vld [vmem:[#allocation7 + $0x68] sm:$0xff]
    %v348 = vld [vmem:[#allocation7 + $0x70] sm:$0xff]
    %v349 = vld [vmem:[#allocation7 + $0x78] sm:$0xff]
    %v350 = vld [vmem:[#allocation7 + $0x80] sm:$0xff]
    %v351 = vld [vmem:[#allocation7 + $0x88] sm:$0xff]
    %v352 = vld [vmem:[#allocation7 + $0x90] sm:$0xff]
    %v353 = vld [vmem:[#allocation7 + $0x98] sm:$0xff]
    %v354 = vld [vmem:[#allocation7 + $0xa0] sm:$0xff]
    %v355 = vld [vmem:[#allocation7 + $0xa8] sm:$0xff]
    %v356 = vld [vmem:[#allocation7 + $0xb0] sm:$0xff]
    %v357 = vld [vmem:[#allocation7 + $0xb8] sm:$0xff]
    %v358 = vld [vmem:[#allocation7 + $0xc0] sm:$0xff]
    %v359 = vld [vmem:[#allocation7 + $0xc8] sm:$0xff]
    %v360 = vld [vmem:[#allocation7 + $0xd0] sm:$0xff]
    %v361 = vld [vmem:[#allocation7 + $0xd8] sm:$0xff]
    %v362 = vld [vmem:[#allocation7 + $0xe0] sm:$0xff]
    %v363 = vld [vmem:[#allocation7 + $0xe8] sm:$0xff]
    %v364 = vld [vmem:[#allocation7 + $0xf0] sm:$0xff]
    %v365 = vld [vmem:[#allocation7 + $0xf8] sm:$0xff]
    %366 = vmatprep.subr.mxu0 %v335
    %367 = vmatpush1.msra.mxu0 %v334
    %368 = vmatprep.subr.mxu0 %v337
    %369 = vmatpush1.msra.mxu0 %v336
    %370 = vmatprep.subr.mxu0 %v339
    %371 = vmatpush1.msra.mxu0 %v338
    %372 = vmatprep.subr.mxu0 %v341
    %373 = vmatpush1.msra.mxu0 %v340
    %374 = vmatprep.subr.mxu0 %v343
    %375 = vmatpush1.msra.mxu0 %v342
    %376 = vmatprep.subr.mxu0 %v345
    %377 = vmatpush1.msra.mxu0 %v344
    %378 = vmatprep.subr.mxu0 %v347
    %379 = vmatpush1.msra.mxu0 %v346
    %380 = vmatprep.subr.mxu0 %v349
    %381 = vmatpush1.msra.mxu0 %v348
    %382 = vmatprep.subr.mxu0 %v351
    %383 = vmatpush1.msra.mxu0 %v350
    %384 = vmatprep.subr.mxu0 %v353
    %385 = vmatpush1.msra.mxu0 %v352
    %386 = vmatprep.subr.mxu0 %v355
    %387 = vmatpush1.msra.mxu0 %v354
    %388 = vmatprep.subr.mxu0 %v357
    %389 = vmatpush1.msra.mxu0 %v356
    %390 = vmatprep.subr.mxu0 %v359
    %391 = vmatpush1.msra.mxu0 %v358
    %392 = vmatprep.subr.mxu0 %v361
    %393 = vmatpush1.msra.mxu0 %v360
    %394 = vmatprep.subr.mxu0 %v363
    %395 = vmatpush1.msra.mxu0 %v362
    %396 = vmatprep.subr.mxu0 %v365
    %397 = vmatpush1.msra.mxu0 %v364
    %398 = vmatprep.subr.mxu0 0.0
    %399 = vmatpush1.msra.mxu0 0.0
    %400 = vmatprep.subr.mxu0 0.0
    %401 = vmatpush1.msra.mxu0 0.0
    %402 = vmatprep.subr.mxu0 0.0
    %403 = vmatpush1.msra.mxu0 0.0
    %404 = vmatprep.subr.mxu0 0.0
    %405 = vmatpush1.msra.mxu0 0.0
    %406 = vmatprep.subr.mxu0 0.0
    %407 = vmatpush1.msra.mxu0 0.0
    %408 = vmatprep.subr.mxu0 0.0
    %409 = vmatpush1.msra.mxu0 0.0
    %410 = vmatprep.subr.mxu0 0.0
    %411 = vmatpush1.msra.mxu0 0.0
    %412 = vmatprep.subr.mxu0 0.0
    %413 = vmatpush1.msra.mxu0 0.0
    %414 = vmatprep.subr.mxu0 0.0
    %415 = vmatpush1.msra.mxu0 0.0
    %416 = vmatprep.subr.mxu0 0.0
    %417 = vmatpush1.msra.mxu0 0.0
    %418 = vmatprep.subr.mxu0 0.0
    %419 = vmatpush1.msra.mxu0 0.0
    %420 = vmatprep.subr.mxu0 0.0
    %421 = vmatpush1.msra.mxu0 0.0
    %422 = vmatprep.subr.mxu0 0.0
    %423 = vmatpush1.msra.mxu0 0.0
    %424 = vmatprep.subr.mxu0 0.0
    %425 = vmatpush1.msra.mxu0 0.0
    %426 = vmatprep.subr.mxu0 0.0
    %427 = vmatpush1.msra.mxu0 0.0
    %428 = vmatprep.subr.mxu0 0.0
    %429 = vmatpush1.msra.mxu0 0.0
    %430 = vmatprep.mubr.f32.mxu0 0.0
    %431 = vmatmul.mubr.f32.gmra.mrb[0].mxu0 %v331
    %v432 = vpop.f32.mrb[0].mxu0
    %v433 = vadd.f32 0.0, %v432
    %v434 = vpop.f32.mrb[0].mxu0
    %v435 = vadd.f32 0.0, %v434
    %436 = vdwg.mxu0
    %v437 = vadd.f32 %v332, %v433
    %v438 = vadd.f32 %v333, %v435
    %v439 = vxor.u32 %v437, 2147483648
    %v440 = vmul.f32 %v439, 1.442695
    %v441 = vpow.pop %v440
    %v442 = vadd.f32 %v441, 1.0
    %v443 = vrcp.pop %v442
    %v444 = vmul.f32 1.0, %v443
    %v445 = vmax.f32 %v438, 0.0
    %v446 = vsub.f32 1.0, %v444
    %v447 = vmul.f32 %v446, %v331
    %v448 = vmul.f32 %v444, %v445
    %v449 = vadd.f32 %v447, %v448
    %v450 = vld [vmem:[#allocation3 + $0x10] sm:$0xff]
    %v451 = vld [vmem:[#allocation3 + $0x18] sm:$0xff]
    %452 = vmatprep.subr.mxu0 %v335
    %453 = vmatpush1.msra.mxu0 %v334
    %454 = vmatprep.subr.mxu0 %v337
    %455 = vmatpush1.msra.mxu0 %v336
    %456 = vmatprep.subr.mxu0 %v339
    %457 = vmatpush1.msra.mxu0 %v338
    %458 = vmatprep.subr.mxu0 %v341
    %459 = vmatpush1.msra.mxu0 %v340
    %460 = vmatprep.subr.mxu0 %v343
    %461 = vmatpush1.msra.mxu0 %v342
    %462 = vmatprep.subr.mxu0 %v345
    %463 = vmatpush1.msra.mxu0 %v344
    %464 = vmatprep.subr.mxu0 %v347
    %465 = vmatpush1.msra.mxu0 %v346
    %466 = vmatprep.subr.mxu0 %v349
    %467 = vmatpush1.msra.mxu0 %v348
    %468 = vmatprep.subr.mxu0 %v351
    %469 = vmatpush1.msra.mxu0 %v350
    %470 = vmatprep.subr.mxu0 %v353
    %471 = vmatpush1.msra.mxu0 %v352
    %472 = vmatprep.subr.mxu0 %v355
    %473 = vmatpush1.msra.mxu0 %v354
    %474 = vmatprep.subr.mxu0 %v357
    %475 = vmatpush1.msra.mxu0 %v356
    %476 = vmatprep.subr.mxu0 %v359
    %477 = vmatpush1.msra.mxu0 %v358
    %478 = vmatprep.subr.mxu0 %v361
    %479 = vmatpush1.msra.mxu0 %v360
    %480 = vmatprep.subr.mxu0 %v363
    %481 = vmatpush1.msra.mxu0 %v362
    %482 = vmatprep.subr.mxu0 %v365
    %483 = vmatpush1.msra.mxu0 %v364
    %484 = vmatprep.subr.mxu0 0.0
    %485 = vmatpush1.msra.mxu0 0.0
    %486 = vmatprep.subr.mxu0 0.0
    %487 = vmatpush1.msra.mxu0 0.0
    %488 = vmatprep.subr.mxu0 0.0
    %489 = vmatpush1.msra.mxu0 0.0
    %490 = vmatprep.subr.mxu0 0.0
    %491 = vmatpush1.msra.mxu0 0.0
    %492 = vmatprep.subr.mxu0 0.0
    %493 = vmatpush1.msra.mxu0 0.0
    %494 = vmatprep.subr.mxu0 0.0
    %495 = vmatpush1.msra.mxu0 0.0
    %496 = vmatprep.subr.mxu0 0.0
    %497 = vmatpush1.msra.mxu0 0.0
    %498 = vmatprep.subr.mxu0 0.0
    %499 = vmatpush1.msra.mxu0 0.0
    %500 = vmatprep.subr.mxu0 0.0
    %501 = vmatpush1.msra.mxu0 0.0
    %502 = vmatprep.subr.mxu0 0.0
    %503 = vmatpush1.msra.mxu0 0.0
    %504 = vmatprep.subr.mxu0 0.0
    %505 = vmatpush1.msra.mxu0 0.0
    %506 = vmatprep.subr.mxu0 0.0
    %507 = vmatpush1.msra.mxu0 0.0
    %508 = vmatprep.subr.mxu0 0.0
    %509 = vmatpush1.msra.mxu0 0.0
    %510 = vmatprep.subr.mxu0 0.0
    %511 = vmatpush1.msra.mxu0 0.0
    %512 = vmatprep.subr.mxu0 0.0
    %513 = vmatpush1.msra.mxu0 0.0
    %514 = vmatprep.subr.mxu0 0.0
    %515 = vmatpush1.msra.mxu0 0.0
    %516 = vmatprep.mubr.f32.mxu0 0.0
    %517 = vmatmul.mubr.f32.gmra.mrb[0].mxu0 %v449
    %v518 = vpop.f32.mrb[0].mxu0
    %v519 = vadd.f32 0.0, %v518
    %v520 = vpop.f32.mrb[0].mxu0
    %v521 = vadd.f32 0.0, %v520
    %522 = vdwg.mxu0
    %v523 = vadd.f32 %v450, %v519
    %v524 = vadd.f32 %v451, %v521
    %v525 = vxor.u32 %v523, 2147483648
    %v526 = vmul.f32 %v525, 1.442695
    %v527 = vpow.pop %v526
    %v528 = vadd.f32 %v527, 1.0
    %v529 = vrcp.pop %v528
    %v530 = vmul.f32 1.0, %v529
    %v531 = vmax.f32 %v524, 0.0
    %v532 = vsub.f32 1.0, %v530
    %v533 = vmul.f32 %v532, %v449
    %v534 = vmul.f32 %v530, %v531
    %v535 = vadd.f32 %v533, %v534
    %v536 = vld [vmem:[#allocation3 + $0x20] sm:$0xff]
    %v537 = vld [vmem:[#allocation3 + $0x28] sm:$0xff]
    %538 = vmatprep.subr.mxu0 %v335
    %539 = vmatpush1.msra.mxu0 %v334
    %540 = vmatprep.subr.mxu0 %v337
    %541 = vmatpush1.msra.mxu0 %v336
    %542 = vmatprep.subr.mxu0 %v339
    %543 = vmatpush1.msra.mxu0 %v338
    %544 = vmatprep.subr.mxu0 %v341
    %545 = vmatpush1.msra.mxu0 %v340
    %546 = vmatprep.subr.mxu0 %v343
    %547 = vmatpush1.msra.mxu0 %v342
    %548 = vmatprep.subr.mxu0 %v345
    %549 = vmatpush1.msra.mxu0 %v344
    %550 = vmatprep.subr.mxu0 %v347
    %551 = vmatpush1.msra.mxu0 %v346
    %552 = vmatprep.subr.mxu0 %v349
    %553 = vmatpush1.msra.mxu0 %v348
    %554 = vmatprep.subr.mxu0 %v351
    %555 = vmatpush1.msra.mxu0 %v350
    %556 = vmatprep.subr.mxu0 %v353
    %557 = vmatpush1.msra.mxu0 %v352
    %558 = vmatprep.subr.mxu0 %v355
    %559 = vmatpush1.msra.mxu0 %v354
    %560 = vmatprep.subr.mxu0 %v357
    %561 = vmatpush1.msra.mxu0 %v356
    %562 = vmatprep.subr.mxu0 %v359
    %563 = vmatpush1.msra.mxu0 %v358
    %564 = vmatprep.subr.mxu0 %v361
    %565 = vmatpush1.msra.mxu0 %v360
    %566 = vmatprep.subr.mxu0 %v363
    %567 = vmatpush1.msra.mxu0 %v362
    %568 = vmatprep.subr.mxu0 %v365
    %569 = vmatpush1.msra.mxu0 %v364
    %570 = vmatprep.subr.mxu0 0.0
    %571 = vmatpush1.msra.mxu0 0.0
    %572 = vmatprep.subr.mxu0 0.0
    %573 = vmatpush1.msra.mxu0 0.0
    %574 = vmatprep.subr.mxu0 0.0
    %575 = vmatpush1.msra.mxu0 0.0
    %576 = vmatprep.subr.mxu0 0.0
    %577 = vmatpush1.msra.mxu0 0.0
    %578 = vmatprep.subr.mxu0 0.0
    %579 = vmatpush1.msra.mxu0 0.0
    %580 = vmatprep.subr.mxu0 0.0
    %581 = vmatpush1.msra.mxu0 0.0
    %582 = vmatprep.subr.mxu0 0.0
    %583 = vmatpush1.msra.mxu0 0.0
    %584 = vmatprep.subr.mxu0 0.0
    %585 = vmatpush1.msra.mxu0 0.0
    %586 = vmatprep.subr.mxu0 0.0
    %587 = vmatpush1.msra.mxu0 0.0
    %588 = vmatprep.subr.mxu0 0.0
    %589 = vmatpush1.msra.mxu0 0.0
    %590 = vmatprep.subr.mxu0 0.0
    %591 = vmatpush1.msra.mxu0 0.0
    %592 = vmatprep.subr.mxu0 0.0
    %593 = vmatpush1.msra.mxu0 0.0
    %594 = vmatprep.subr.mxu0 0.0
    %595 = vmatpush1.msra.mxu0 0.0
    %596 = vmatprep.subr.mxu0 0.0
    %597 = vmatpush1.msra.mxu0 0.0
    %598 = vmatprep.subr.mxu0 0.0
    %599 = vmatpush1.msra.mxu0 0.0
    %600 = vmatprep.subr.mxu0 0.0
    %601 = vmatpush1.msra.mxu0 0.0
    %602 = vmatprep.mubr.f32.mxu0 0.0
    %603 = vmatmul.mubr.f32.gmra.mrb[0].mxu0 %v535
    %v604 = vpop.f32.mrb[0].mxu0
    %v605 = vadd.f32 0.0, %v604
    %v606 = vpop.f32.mrb[0].mxu0
    %v607 = vadd.f32 0.0, %v606
    %608 = vdwg.mxu0
    %v609 = vadd.f32 %v536, %v605
    %v610 = vadd.f32 %v537, %v607
    %v611 = vxor.u32 %v609, 2147483648
    %v612 = vmul.f32 %v611, 1.442695
    %v613 = vpow.pop %v612
    %v614 = vadd.f32 %v613, 1.0
    %v615 = vrcp.pop %v614
    %v616 = vmul.f32 1.0, %v615
    %v617 = vmax.f32 %v610, 0.0
    %v618 = vsub.f32 1.0, %v616
    %v619 = vmul.f32 %v618, %v535
    %v620 = vmul.f32 %v616, %v617
    %v621 = vadd.f32 %v619, %v620
    %v622 = vld [vmem:[#allocation3 + $0x30] sm:$0xff]
    %v623 = vld [vmem:[#allocation3 + $0x38] sm:$0xff]
    %624 = vmatprep.subr.mxu0 %v335
    %625 = vmatpush1.msra.mxu0 %v334
    %626 = vmatprep.subr.mxu0 %v337
    %627 = vmatpush1.msra.mxu0 %v336
    %628 = vmatprep.subr.mxu0 %v339
    %629 = vmatpush1.msra.mxu0 %v338
    %630 = vmatprep.subr.mxu0 %v341
    %631 = vmatpush1.msra.mxu0 %v340
    %632 = vmatprep.subr.mxu0 %v343
    %633 = vmatpush1.msra.mxu0 %v342
    %634 = vmatprep.subr.mxu0 %v345
    %635 = vmatpush1.msra.mxu0 %v344
    %636 = vmatprep.subr.mxu0 %v347
    %637 = vmatpush1.msra.mxu0 %v346
    %638 = vmatprep.subr.mxu0 %v349
    %639 = vmatpush1.msra.mxu0 %v348
    %640 = vmatprep.subr.mxu0 %v351
    %641 = vmatpush1.msra.mxu0 %v350
    %642 = vmatprep.subr.mxu0 %v353
    %643 = vmatpush1.msra.mxu0 %v352
    %644 = vmatprep.subr.mxu0 %v355
    %645 = vmatpush1.msra.mxu0 %v354
    %646 = vmatprep.subr.mxu0 %v357
    %647 = vmatpush1.msra.mxu0 %v356
    %648 = vmatprep.subr.mxu0 %v359
    %649 = vmatpush1.msra.mxu0 %v358
    %650 = vmatprep.subr.mxu0 %v361
    %651 = vmatpush1.msra.mxu0 %v360
    %652 = vmatprep.subr.mxu0 %v363
    %653 = vmatpush1.msra.mxu0 %v362
    %654 = vmatprep.subr.mxu0 %v365
    %655 = vmatpush1.msra.mxu0 %v364
    %656 = vmatprep.subr.mxu0 0.0
    %657 = vmatpush1.msra.mxu0 0.0
    %658 = vmatprep.subr.mxu0 0.0
    %659 = vmatpush1.msra.mxu0 0.0
    %660 = vmatprep.subr.mxu0 0.0
    %661 = vmatpush1.msra.mxu0 0.0
    %662 = vmatprep.subr.mxu0 0.0
    %663 = vmatpush1.msra.mxu0 0.0
    %664 = vmatprep.subr.mxu0 0.0
    %665 = vmatpush1.msra.mxu0 0.0
    %666 = vmatprep.subr.mxu0 0.0
    %667 = vmatpush1.msra.mxu0 0.0
    %668 = vmatprep.subr.mxu0 0.0
    %669 = vmatpush1.msra.mxu0 0.0
    %670 = vmatprep.subr.mxu0 0.0
    %671 = vmatpush1.msra.mxu0 0.0
    %672 = vmatprep.subr.mxu0 0.0
    %673 = vmatpush1.msra.mxu0 0.0
    %674 = vmatprep.subr.mxu0 0.0
    %675 = vmatpush1.msra.mxu0 0.0
    %676 = vmatprep.subr.mxu0 0.0
    %677 = vmatpush1.msra.mxu0 0.0
    %678 = vmatprep.subr.mxu0 0.0
    %679 = vmatpush1.msra.mxu0 0.0
    %680 = vmatprep.subr.mxu0 0.0
    %681 = vmatpush1.msra.mxu0 0.0
    %682 = vmatprep.subr.mxu0 0.0
    %683 = vmatpush1.msra.mxu0 0.0
    %684 = vmatprep.subr.mxu0 0.0
    %685 = vmatpush1.msra.mxu0 0.0
    %686 = vmatprep.subr.mxu0 0.0
    %687 = vmatpush1.msra.mxu0 0.0
    %688 = vmatprep.mubr.f32.mxu0 0.0
    %689 = vmatmul.mubr.f32.gmra.mrb[0].mxu0 %v621
    %v690 = vpop.f32.mrb[0].mxu0
    %v691 = vadd.f32 0.0, %v690
    %v692 = vpop.f32.mrb[0].mxu0
    %v693 = vadd.f32 0.0, %v692
    %694 = vdwg.mxu0
    %v695 = vadd.f32 %v622, %v691
    %v696 = vadd.f32 %v623, %v693
    %v697 = vxor.u32 %v695, 2147483648
    %v698 = vmul.f32 %v697, 1.442695
    %v699 = vpow.pop %v698
    %v700 = vadd.f32 %v699, 1.0
    %v701 = vrcp.pop %v700
    %v702 = vmul.f32 1.0, %v701
    %v703 = vmax.f32 %v696, 0.0
    %v704 = vsub.f32 1.0, %v702
    %v705 = vmul.f32 %v704, %v621
    %v706 = vmul.f32 %v702, %v703
    %v707 = vadd.f32 %v705, %v706
    %v708 = vld [vmem:[#allocation3 + $0x40] sm:$0xff]
    %v709 = vld [vmem:[#allocation3 + $0x48] sm:$0xff]
    %710 = vmatprep.subr.mxu0 %v335
    %711 = vmatpush1.msra.mxu0 %v334
    %712 = vmatprep.subr.mxu0 %v337
    %713 = vmatpush1.msra.mxu0 %v336
    %714 = vmatprep.subr.mxu0 %v339
    %715 = vmatpush1.msra.mxu0 %v338
    %716 = vmatprep.subr.mxu0 %v341
    %717 = vmatpush1.msra.mxu0 %v340
    %718 = vmatprep.subr.mxu0 %v343
    %719 = vmatpush1.msra.mxu0 %v342
    %720 = vmatprep.subr.mxu0 %v345
    %721 = vmatpush1.msra.mxu0 %v344
    %722 = vmatprep.subr.mxu0 %v347
    %723 = vmatpush1.msra.mxu0 %v346
    %724 = vmatprep.subr.mxu0 %v349
    %725 = vmatpush1.msra.mxu0 %v348
    %726 = vmatprep.subr.mxu0 %v351
    %727 = vmatpush1.msra.mxu0 %v350
    %728 = vmatprep.subr.mxu0 %v353
    %729 = vmatpush1.msra.mxu0 %v352
    %730 = vmatprep.subr.mxu0 %v355
    %731 = vmatpush1.msra.mxu0 %v354
    %732 = vmatprep.subr.mxu0 %v357
    %733 = vmatpush1.msra.mxu0 %v356
    %734 = vmatprep.subr.mxu0 %v359
    %735 = vmatpush1.msra.mxu0 %v358
    %736 = vmatprep.subr.mxu0 %v361
    %737 = vmatpush1.msra.mxu0 %v360
    %738 = vmatprep.subr.mxu0 %v363
    %739 = vmatpush1.msra.mxu0 %v362
    %740 = vmatprep.subr.mxu0 %v365
    %741 = vmatpush1.msra.mxu0 %v364
    %742 = vmatprep.subr.mxu0 0.0
    %743 = vmatpush1.msra.mxu0 0.0
    %744 = vmatprep.subr.mxu0 0.0
    %745 = vmatpush1.msra.mxu0 0.0
    %746 = vmatprep.subr.mxu0 0.0
    %747 = vmatpush1.msra.mxu0 0.0
    %748 = vmatprep.subr.mxu0 0.0
    %749 = vmatpush1.msra.mxu0 0.0
    %750 = vmatprep.subr.mxu0 0.0
    %751 = vmatpush1.msra.mxu0 0.0
    %752 = vmatprep.subr.mxu0 0.0
    %753 = vmatpush1.msra.mxu0 0.0
    %754 = vmatprep.subr.mxu0 0.0
    %755 = vmatpush1.msra.mxu0 0.0
    %756 = vmatprep.subr.mxu0 0.0
    %757 = vmatpush1.msra.mxu0 0.0
    %758 = vmatprep.subr.mxu0 0.0
    %759 = vmatpush1.msra.mxu0 0.0
    %760 = vmatprep.subr.mxu0 0.0
    %761 = vmatpush1.msra.mxu0 0.0
    %762 = vmatprep.subr.mxu0 0.0
    %763 = vmatpush1.msra.mxu0 0.0
    %764 = vmatprep.subr.mxu0 0.0
    %765 = vmatpush1.msra.mxu0 0.0
    %766 = vmatprep.subr.mxu0 0.0
    %767 = vmatpush1.msra.mxu0 0.0
    %768 = vmatprep.subr.mxu0 0.0
    %769 = vmatpush1.msra.mxu0 0.0
    %770 = vmatprep.subr.mxu0 0.0
    %771 = vmatpush1.msra.mxu0 0.0
    %772 = vmatprep.subr.mxu0 0.0
    %773 = vmatpush1.msra.mxu0 0.0
    %774 = vmatprep.mubr.f32.mxu0 0.0
    %775 = vmatmul.mubr.f32.gmra.mrb[0].mxu0 %v707
    %v776 = vpop.f32.mrb[0].mxu0
    %v777 = vadd.f32 0.0, %v776
    %v778 = vpop.f32.mrb[0].mxu0
    %v779 = vadd.f32 0.0, %v778
    %780 = vdwg.mxu0
    %v781 = vadd.f32 %v708, %v777
    %v782 = vadd.f32 %v709, %v779
    %v783 = vxor.u32 %v781, 2147483648
    %v784 = vmul.f32 %v783, 1.442695
    %v785 = vpow.pop %v784
    %v786 = vadd.f32 %v785, 1.0
    %v787 = vrcp.pop %v786
    %v788 = vmul.f32 1.0, %v787
    %v789 = vmax.f32 %v782, 0.0
    %v790 = vsub.f32 1.0, %v788
    %v791 = vmul.f32 %v790, %v707
    %v792 = vmul.f32 %v788, %v789
    %v793 = vadd.f32 %v791, %v792
    %v794 = vld [vmem:[#allocation3 + $0x50] sm:$0xff]
    %v795 = vld [vmem:[#allocation3 + $0x58] sm:$0xff]
    %796 = vmatprep.subr.mxu0 %v335
    %797 = vmatpush1.msra.mxu0 %v334
    %798 = vmatprep.subr.mxu0 %v337
    %799 = vmatpush1.msra.mxu0 %v336
    %800 = vmatprep.subr.mxu0 %v339
    %801 = vmatpush1.msra.mxu0 %v338
    %802 = vmatprep.subr.mxu0 %v341
    %803 = vmatpush1.msra.mxu0 %v340
    %804 = vmatprep.subr.mxu0 %v343
    %805 = vmatpush1.msra.mxu0 %v342
    %806 = vmatprep.subr.mxu0 %v345
    %807 = vmatpush1.msra.mxu0 %v344
    %808 = vmatprep.subr.mxu0 %v347
    %809 = vmatpush1.msra.mxu0 %v346
    %810 = vmatprep.subr.mxu0 %v349
    %811 = vmatpush1.msra.mxu0 %v348
    %812 = vmatprep.subr.mxu0 %v351
    %813 = vmatpush1.msra.mxu0 %v350
    %814 = vmatprep.subr.mxu0 %v353
    %815 = vmatpush1.msra.mxu0 %v352
    %816 = vmatprep.subr.mxu0 %v355
    %817 = vmatpush1.msra.mxu0 %v354
    %818 = vmatprep.subr.mxu0 %v357
    %819 = vmatpush1.msra.mxu0 %v356
    %820 = vmatprep.subr.mxu0 %v359
    %821 = vmatpush1.msra.mxu0 %v358
    %822 = vmatprep.subr.mxu0 %v361
    %823 = vmatpush1.msra.mxu0 %v360
    %824 = vmatprep.subr.mxu0 %v363
    %825 = vmatpush1.msra.mxu0 %v362
    %826 = vmatprep.subr.mxu0 %v365
    %827 = vmatpush1.msra.mxu0 %v364
    %828 = vmatprep.subr.mxu0 0.0
    %829 = vmatpush1.msra.mxu0 0.0
    %830 = vmatprep.subr.mxu0 0.0
    %831 = vmatpush1.msra.mxu0 0.0
    %832 = vmatprep.subr.mxu0 0.0
    %833 = vmatpush1.msra.mxu0 0.0
    %834 = vmatprep.subr.mxu0 0.0
    %835 = vmatpush1.msra.mxu0 0.0
    %836 = vmatprep.subr.mxu0 0.0
    %837 = vmatpush1.msra.mxu0 0.0
    %838 = vmatprep.subr.mxu0 0.0
    %839 = vmatpush1.msra.mxu0 0.0
    %840 = vmatprep.subr.mxu0 0.0
    %841 = vmatpush1.msra.mxu0 0.0
    %842 = vmatprep.subr.mxu0 0.0
    %843 = vmatpush1.msra.mxu0 0.0
    %844 = vmatprep.subr.mxu0 0.0
    %845 = vmatpush1.msra.mxu0 0.0
    %846 = vmatprep.subr.mxu0 0.0
    %847 = vmatpush1.msra.mxu0 0.0
    %848 = vmatprep.subr.mxu0 0.0
    %849 = vmatpush1.msra.mxu0 0.0
    %850 = vmatprep.subr.mxu0 0.0
    %851 = vmatpush1.msra.mxu0 0.0
    %852 = vmatprep.subr.mxu0 0.0
    %853 = vmatpush1.msra.mxu0 0.0
    %854 = vmatprep.subr.mxu0 0.0
    %855 = vmatpush1.msra.mxu0 0.0
    %856 = vmatprep.subr.mxu0 0.0
    %857 = vmatpush1.msra.mxu0 0.0
    %858 = vmatprep.subr.mxu0 0.0
    %859 = vmatpush1.msra.mxu0 0.0
    %860 = vmatprep.mubr.f32.mxu0 0.0
    %861 = vmatmul.mubr.f32.gmra.mrb[0].mxu0 %v793
    %v862 = vpop.f32.mrb[0].mxu0
    %v863 = vadd.f32 0.0, %v862
    %v864 = vpop.f32.mrb[0].mxu0
    %v865 = vadd.f32 0.0, %v864
    %866 = vdwg.mxu0
    %v867 = vadd.f32 %v794, %v863
    %v868 = vadd.f32 %v795, %v865
    %v869 = vxor.u32 %v867, 2147483648
    %v870 = vmul.f32 %v869, 1.442695
    %v871 = vpow.pop %v870
    %v872 = vadd.f32 %v871, 1.0
    %v873 = vrcp.pop %v872
    %v874 = vmul.f32 1.0, %v873
    %v875 = vmax.f32 %v868, 0.0
    %v876 = vsub.f32 1.0, %v874
    %v877 = vmul.f32 %v876, %v793
    %v878 = vmul.f32 %v874, %v875
    %v879 = vadd.f32 %v877, %v878
    %v880 = vld [vmem:[#allocation3 + $0x60] sm:$0xff]
    %v881 = vld [vmem:[#allocation3 + $0x68] sm:$0xff]
    %882 = vmatprep.subr.mxu0 %v335
    %883 = vmatpush1.msra.mxu0 %v334
    %884 = vmatprep.subr.mxu0 %v337
    %885 = vmatpush1.msra.mxu0 %v336
    %886 = vmatprep.subr.mxu0 %v339
    %887 = vmatpush1.msra.mxu0 %v338
    %888 = vmatprep.subr.mxu0 %v341
    %889 = vmatpush1.msra.mxu0 %v340
    %890 = vmatprep.subr.mxu0 %v343
    %891 = vmatpush1.msra.mxu0 %v342
    %892 = vmatprep.subr.mxu0 %v345
    %893 = vmatpush1.msra.mxu0 %v344
    %894 = vmatprep.subr.mxu0 %v347
    %895 = vmatpush1.msra.mxu0 %v346
    %896 = vmatprep.subr.mxu0 %v349
    %897 = vmatpush1.msra.mxu0 %v348
    %898 = vmatprep.subr.mxu0 %v351
    %899 = vmatpush1.msra.mxu0 %v350
    %900 = vmatprep.subr.mxu0 %v353
    %901 = vmatpush1.msra.mxu0 %v352
    %902 = vmatprep.subr.mxu0 %v355
    %903 = vmatpush1.msra.mxu0 %v354
    %904 = vmatprep.subr.mxu0 %v357
    %905 = vmatpush1.msra.mxu0 %v356
    %906 = vmatprep.subr.mxu0 %v359
    %907 = vmatpush1.msra.mxu0 %v358
    %908 = vmatprep.subr.mxu0 %v361
    %909 = vmatpush1.msra.mxu0 %v360
    %910 = vmatprep.subr.mxu0 %v363
    %911 = vmatpush1.msra.mxu0 %v362
    %912 = vmatprep.subr.mxu0 %v365
    %913 = vmatpush1.msra.mxu0 %v364
    %914 = vmatprep.subr.mxu0 0.0
    %915 = vmatpush1.msra.mxu0 0.0
    %916 = vmatprep.subr.mxu0 0.0
    %917 = vmatpush1.msra.mxu0 0.0
    %918 = vmatprep.subr.mxu0 0.0
    %919 = vmatpush1.msra.mxu0 0.0
    %920 = vmatprep.subr.mxu0 0.0
    %921 = vmatpush1.msra.mxu0 0.0
    %922 = vmatprep.subr.mxu0 0.0
    %923 = vmatpush1.msra.mxu0 0.0
    %924 = vmatprep.subr.mxu0 0.0
    %925 = vmatpush1.msra.mxu0 0.0
    %926 = vmatprep.subr.mxu0 0.0
    %927 = vmatpush1.msra.mxu0 0.0
    %928 = vmatprep.subr.mxu0 0.0
    %929 = vmatpush1.msra.mxu0 0.0
    %930 = vmatprep.subr.mxu0 0.0
    %931 = vmatpush1.msra.mxu0 0.0
    %932 = vmatprep.subr.mxu0 0.0
    %933 = vmatpush1.msra.mxu0 0.0
    %934 = vmatprep.subr.mxu0 0.0
    %935 = vmatpush1.msra.mxu0 0.0
    %936 = vmatprep.subr.mxu0 0.0
    %937 = vmatpush1.msra.mxu0 0.0
    %938 = vmatprep.subr.mxu0 0.0
    %939 = vmatpush1.msra.mxu0 0.0
    %940 = vmatprep.subr.mxu0 0.0
    %941 = vmatpush1.msra.mxu0 0.0
    %942 = vmatprep.subr.mxu0 0.0
    %943 = vmatpush1.msra.mxu0 0.0
    %944 = vmatprep.subr.mxu0 0.0
    %945 = vmatpush1.msra.mxu0 0.0
    %946 = vmatprep.mubr.f32.mxu0 0.0
    %947 = vmatmul.mubr.f32.gmra.mrb[0].mxu0 %v879
    %v948 = vpop.f32.mrb[0].mxu0
    %v949 = vadd.f32 0.0, %v948
    %v950 = vpop.f32.mrb[0].mxu0
    %v951 = vadd.f32 0.0, %v950
    %952 = vdwg.mxu0
    %v953 = vadd.f32 %v880, %v949
    %v954 = vadd.f32 %v881, %v951
    %v955 = vxor.u32 %v953, 2147483648
    %v956 = vmul.f32 %v955, 1.442695
    %v957 = vpow.pop %v956
    %v958 = vadd.f32 %v957, 1.0
    %v959 = vrcp.pop %v958
    %v960 = vmul.f32 1.0, %v959
    %v961 = vmax.f32 %v954, 0.0
    %v962 = vsub.f32 1.0, %v960
    %v963 = vmul.f32 %v962, %v879
    %v964 = vmul.f32 %v960, %v961
    %v965 = vadd.f32 %v963, %v964
    %v966 = vld [vmem:[#allocation3 + $0x70] sm:$0xff]
    %v967 = vld [vmem:[#allocation3 + $0x78] sm:$0xff]
    %968 = vmatprep.subr.mxu0 %v335
    %969 = vmatpush1.msra.mxu0 %v334
    %970 = vmatprep.subr.mxu0 %v337
    %971 = vmatpush1.msra.mxu0 %v336
    %972 = vmatprep.subr.mxu0 %v339
    %973 = vmatpush1.msra.mxu0 %v338
    %974 = vmatprep.subr.mxu0 %v341
    %975 = vmatpush1.msra.mxu0 %v340
    %976 = vmatprep.subr.mxu0 %v343
    %977 = vmatpush1.msra.mxu0 %v342
    %978 = vmatprep.subr.mxu0 %v345
    %979 = vmatpush1.msra.mxu0 %v344
    %980 = vmatprep.subr.mxu0 %v347
    %981 = vmatpush1.msra.mxu0 %v346
    %982 = vmatprep.subr.mxu0 %v349
    %983 = vmatpush1.msra.mxu0 %v348
    %984 = vmatprep.subr.mxu0 %v351
    %985 = vmatpush1.msra.mxu0 %v350
    %986 = vmatprep.subr.mxu0 %v353
    %987 = vmatpush1.msra.mxu0 %v352
    %988 = vmatprep.subr.mxu0 %v355
    %989 = vmatpush1.msra.mxu0 %v354
    %990 = vmatprep.subr.mxu0 %v357
    %991 = vmatpush1.msra.mxu0 %v356
    %992 = vmatprep.subr.mxu0 %v359
    %993 = vmatpush1.msra.mxu0 %v358
    %994 = vmatprep.subr.mxu0 %v361
    %995 = vmatpush1.msra.mxu0 %v360
    %996 = vmatprep.subr.mxu0 %v363
    %997 = vmatpush1.msra.mxu0 %v362
    %998 = vmatprep.subr.mxu0 %v365
    %999 = vmatpush1.msra.mxu0 %v364
    %1000 = vmatprep.subr.mxu0 0.0
    %1001 = vmatpush1.msra.mxu0 0.0
    %1002 = vmatprep.subr.mxu0 0.0
    %1003 = vmatpush1.msra.mxu0 0.0
    %1004 = vmatprep.subr.mxu0 0.0
    %1005 = vmatpush1.msra.mxu0 0.0
    %1006 = vmatprep.subr.mxu0 0.0
    %1007 = vmatpush1.msra.mxu0 0.0
    %1008 = vmatprep.subr.mxu0 0.0
    %1009 = vmatpush1.msra.mxu0 0.0
    %1010 = vmatprep.subr.mxu0 0.0
    %1011 = vmatpush1.msra.mxu0 0.0
    %1012 = vmatprep.subr.mxu0 0.0
    %1013 = vmatpush1.msra.mxu0 0.0
    %1014 = vmatprep.subr.mxu0 0.0
    %1015 = vmatpush1.msra.mxu0 0.0
    %1016 = vmatprep.subr.mxu0 0.0
    %1017 = vmatpush1.msra.mxu0 0.0
    %1018 = vmatprep.subr.mxu0 0.0
    %1019 = vmatpush1.msra.mxu0 0.0
    %1020 = vmatprep.subr.mxu0 0.0
    %1021 = vmatpush1.msra.mxu0 0.0
    %1022 = vmatprep.subr.mxu0 0.0
    %1023 = vmatpush1.msra.mxu0 0.0
    %1024 = vmatprep.subr.mxu0 0.0
    %1025 = vmatpush1.msra.mxu0 0.0
    %1026 = vmatprep.subr.mxu0 0.0
    %1027 = vmatpush1.msra.mxu0 0.0
    %1028 = vmatprep.subr.mxu0 0.0
    %1029 = vmatpush1.msra.mxu0 0.0
    %1030 = vmatprep.subr.mxu0 0.0
    %1031 = vmatpush1.msra.mxu0 0.0
    %1032 = vmatprep.mubr.f32.mxu0 0.0
    %1033 = vmatmul.mubr.f32.gmra.mrb[0].mxu0 %v965
    %v1034 = vpop.f32.mrb[0].mxu0
    %v1035 = vadd.f32 0.0, %v1034
    %v1036 = vpop.f32.mrb[0].mxu0
    %v1037 = vadd.f32 0.0, %v1036
    %1038 = vdwg.mxu0
    %v1039 = vadd.f32 %v966, %v1035
    %v1040 = vadd.f32 %v967, %v1037
    %v1041 = vxor.u32 %v1039, 2147483648
    %v1042 = vmul.f32 %v1041, 1.442695
    %v1043 = vpow.pop %v1042
    %v1044 = vadd.f32 %v1043, 1.0
    %v1045 = vrcp.pop %v1044
    %v1046 = vmul.f32 1.0, %v1045
    %v1047 = vmax.f32 %v1040, 0.0
    %v1048 = vsub.f32 1.0, %v1046
    %v1049 = vmul.f32 %v1048, %v965
    %v1050 = vmul.f32 %v1046, %v1047
    %v1051 = vadd.f32 %v1049, %v1050
    %v1052 = vld [vmem:[#allocation3 + $0x80] sm:$0xff]
    %v1053 = vld [vmem:[#allocation3 + $0x88] sm:$0xff]
    %1054 = vmatprep.subr.mxu0 %v335
    %1055 = vmatpush1.msra.mxu0 %v334
    %1056 = vmatprep.subr.mxu0 %v337
    %1057 = vmatpush1.msra.mxu0 %v336
    %1058 = vmatprep.subr.mxu0 %v339
    %1059 = vmatpush1.msra.mxu0 %v338
    %1060 = vmatprep.subr.mxu0 %v341
    %1061 = vmatpush1.msra.mxu0 %v340
    %1062 = vmatprep.subr.mxu0 %v343
    %1063 = vmatpush1.msra.mxu0 %v342
    %1064 = vmatprep.subr.mxu0 %v345
    %1065 = vmatpush1.msra.mxu0 %v344
    %1066 = vmatprep.subr.mxu0 %v347
    %1067 = vmatpush1.msra.mxu0 %v346
    %1068 = vmatprep.subr.mxu0 %v349
    %1069 = vmatpush1.msra.mxu0 %v348
    %1070 = vmatprep.subr.mxu0 %v351
    %1071 = vmatpush1.msra.mxu0 %v350
    %1072 = vmatprep.subr.mxu0 %v353
    %1073 = vmatpush1.msra.mxu0 %v352
    %1074 = vmatprep.subr.mxu0 %v355
    %1075 = vmatpush1.msra.mxu0 %v354
    %1076 = vmatprep.subr.mxu0 %v357
    %1077 = vmatpush1.msra.mxu0 %v356
    %1078 = vmatprep.subr.mxu0 %v359
    %1079 = vmatpush1.msra.mxu0 %v358
    %1080 = vmatprep.subr.mxu0 %v361
    %1081 = vmatpush1.msra.mxu0 %v360
    %1082 = vmatprep.subr.mxu0 %v363
    %1083 = vmatpush1.msra.mxu0 %v362
    %1084 = vmatprep.subr.mxu0 %v365
    %1085 = vmatpush1.msra.mxu0 %v364
    %1086 = vmatprep.subr.mxu0 0.0
    %1087 = vmatpush1.msra.mxu0 0.0
    %1088 = vmatprep.subr.mxu0 0.0
    %1089 = vmatpush1.msra.mxu0 0.0
    %1090 = vmatprep.subr.mxu0 0.0
    %1091 = vmatpush1.msra.mxu0 0.0
    %1092 = vmatprep.subr.mxu0 0.0
    %1093 = vmatpush1.msra.mxu0 0.0
    %1094 = vmatprep.subr.mxu0 0.0
    %1095 = vmatpush1.msra.mxu0 0.0
    %1096 = vmatprep.subr.mxu0 0.0
    %1097 = vmatpush1.msra.mxu0 0.0
    %1098 = vmatprep.subr.mxu0 0.0
    %1099 = vmatpush1.msra.mxu0 0.0
    %1100 = vmatprep.subr.mxu0 0.0
    %1101 = vmatpush1.msra.mxu0 0.0
    %1102 = vmatprep.subr.mxu0 0.0
    %1103 = vmatpush1.msra.mxu0 0.0
    %1104 = vmatprep.subr.mxu0 0.0
    %1105 = vmatpush1.msra.mxu0 0.0
    %1106 = vmatprep.subr.mxu0 0.0
    %1107 = vmatpush1.msra.mxu0 0.0
    %1108 = vmatprep.subr.mxu0 0.0
    %1109 = vmatpush1.msra.mxu0 0.0
    %1110 = vmatprep.subr.mxu0 0.0
    %1111 = vmatpush1.msra.mxu0 0.0
    %1112 = vmatprep.subr.mxu0 0.0
    %1113 = vmatpush1.msra.mxu0 0.0
    %1114 = vmatprep.subr.mxu0 0.0
    %1115 = vmatpush1.msra.mxu0 0.0
    %1116 = vmatprep.subr.mxu0 0.0
    %1117 = vmatpush1.msra.mxu0 0.0
    %1118 = vmatprep.mubr.f32.mxu0 0.0
    %1119 = vmatmul.mubr.f32.gmra.mrb[0].mxu0 %v1051
    %v1120 = vpop.f32.mrb[0].mxu0
    %v1121 = vadd.f32 0.0, %v1120
    %v1122 = vpop.f32.mrb[0].mxu0
    %v1123 = vadd.f32 0.0, %v1122
    %1124 = vdwg.mxu0
    %v1125 = vadd.f32 %v1052, %v1121
    %v1126 = vadd.f32 %v1053, %v1123
    %v1127 = vxor.u32 %v1125, 2147483648
    %v1128 = vmul.f32 %v1127, 1.442695
    %v1129 = vpow.pop %v1128
    %v1130 = vadd.f32 %v1129, 1.0
    %v1131 = vrcp.pop %v1130
    %v1132 = vmul.f32 1.0, %v1131
    %v1133 = vmax.f32 %v1126, 0.0
    %v1134 = vsub.f32 1.0, %v1132
    %v1135 = vmul.f32 %v1134, %v1051
    %v1136 = vmul.f32 %v1132, %v1133
    %v1137 = vadd.f32 %v1135, %v1136
    %v1138 = vld [vmem:[#allocation3 + $0x90] sm:$0xff]
    %v1139 = vld [vmem:[#allocation3 + $0x98] sm:$0xff]
    %1140 = vmatprep.subr.mxu0 %v335
    %1141 = vmatpush1.msra.mxu0 %v334
    %1142 = vmatprep.subr.mxu0 %v337
    %1143 = vmatpush1.msra.mxu0 %v336
    %1144 = vmatprep.subr.mxu0 %v339
    %1145 = vmatpush1.msra.mxu0 %v338
    %1146 = vmatprep.subr.mxu0 %v341
    %1147 = vmatpush1.msra.mxu0 %v340
    %1148 = vmatprep.subr.mxu0 %v343
    %1149 = vmatpush1.msra.mxu0 %v342
    %1150 = vmatprep.subr.mxu0 %v345
    %1151 = vmatpush1.msra.mxu0 %v344
    %1152 = vmatprep.subr.mxu0 %v347
    %1153 = vmatpush1.msra.mxu0 %v346
    %1154 = vmatprep.subr.mxu0 %v349
    %1155 = vmatpush1.msra.mxu0 %v348
    %1156 = vmatprep.subr.mxu0 %v351
    %1157 = vmatpush1.msra.mxu0 %v350
    %1158 = vmatprep.subr.mxu0 %v353
    %1159 = vmatpush1.msra.mxu0 %v352
    %1160 = vmatprep.subr.mxu0 %v355
    %1161 = vmatpush1.msra.mxu0 %v354
    %1162 = vmatprep.subr.mxu0 %v357
    %1163 = vmatpush1.msra.mxu0 %v356
    %1164 = vmatprep.subr.mxu0 %v359
    %1165 = vmatpush1.msra.mxu0 %v358
    %1166 = vmatprep.subr.mxu0 %v361
    %1167 = vmatpush1.msra.mxu0 %v360
    %1168 = vmatprep.subr.mxu0 %v363
    %1169 = vmatpush1.msra.mxu0 %v362
    %1170 = vmatprep.subr.mxu0 %v365
    %1171 = vmatpush1.msra.mxu0 %v364
    %1172 = vmatprep.subr.mxu0 0.0
    %1173 = vmatpush1.msra.mxu0 0.0
    %1174 = vmatprep.subr.mxu0 0.0
    %1175 = vmatpush1.msra.mxu0 0.0
    %1176 = vmatprep.subr.mxu0 0.0
    %1177 = vmatpush1.msra.mxu0 0.0
    %1178 = vmatprep.subr.mxu0 0.0
    %1179 = vmatpush1.msra.mxu0 0.0
    %1180 = vmatprep.subr.mxu0 0.0
    %1181 = vmatpush1.msra.mxu0 0.0
    %1182 = vmatprep.subr.mxu0 0.0
    %1183 = vmatpush1.msra.mxu0 0.0
    %1184 = vmatprep.subr.mxu0 0.0
    %1185 = vmatpush1.msra.mxu0 0.0
    %1186 = vmatprep.subr.mxu0 0.0
    %1187 = vmatpush1.msra.mxu0 0.0
    %1188 = vmatprep.subr.mxu0 0.0
    %1189 = vmatpush1.msra.mxu0 0.0
    %1190 = vmatprep.subr.mxu0 0.0
    %1191 = vmatpush1.msra.mxu0 0.0
    %1192 = vmatprep.subr.mxu0 0.0
    %1193 = vmatpush1.msra.mxu0 0.0
    %1194 = vmatprep.subr.mxu0 0.0
    %1195 = vmatpush1.msra.mxu0 0.0
    %1196 = vmatprep.subr.mxu0 0.0
    %1197 = vmatpush1.msra.mxu0 0.0
    %1198 = vmatprep.subr.mxu0 0.0
    %1199 = vmatpush1.msra.mxu0 0.0
    %1200 = vmatprep.subr.mxu0 0.0
    %1201 = vmatpush1.msra.mxu0 0.0
    %1202 = vmatprep.subr.mxu0 0.0
    %1203 = vmatpush1.msra.mxu0 0.0
    %1204 = vmatprep.mubr.f32.mxu0 0.0
    %1205 = vmatmul.mubr.f32.gmra.mrb[0].mxu0 %v1137
    %v1206 = vpop.f32.mrb[0].mxu0
    %v1207 = vadd.f32 0.0, %v1206
    %v1208 = vpop.f32.mrb[0].mxu0
    %v1209 = vadd.f32 0.0, %v1208
    %1210 = vdwg.mxu0
    %v1211 = vadd.f32 %v1138, %v1207
    %v1212 = vadd.f32 %v1139, %v1209
    %v1213 = vxor.u32 %v1211, 2147483648
    %v1214 = vmul.f32 %v1213, 1.442695
    %v1215 = vpow.pop %v1214
    %v1216 = vadd.f32 %v1215, 1.0
    %v1217 = vrcp.pop %v1216
    %v1218 = vmul.f32 1.0, %v1217
    %v1219 = vmax.f32 %v1212, 0.0
    %v1220 = vsub.f32 1.0, %v1218
    %v1221 = vmul.f32 %v1220, %v1137
    %v1222 = vmul.f32 %v1218, %v1219
    %v1223 = vadd.f32 %v1221, %v1222
    %v1224 = vld [vmem:[#allocation3 + $0xa0] sm:$0xff]
    %v1225 = vld [vmem:[#allocation3 + $0xa8] sm:$0xff]
    %1226 = vmatprep.subr.mxu0 %v335
    %1227 = vmatpush1.msra.mxu0 %v334
    %1228 = vmatprep.subr.mxu0 %v337
    %1229 = vmatpush1.msra.mxu0 %v336
    %1230 = vmatprep.subr.mxu0 %v339
    %1231 = vmatpush1.msra.mxu0 %v338
    %1232 = vmatprep.subr.mxu0 %v341
    %1233 = vmatpush1.msra.mxu0 %v340
    %1234 = vmatprep.subr.mxu0 %v343
    %1235 = vmatpush1.msra.mxu0 %v342
    %1236 = vmatprep.subr.mxu0 %v345
    %1237 = vmatpush1.msra.mxu0 %v344
    %1238 = vmatprep.subr.mxu0 %v347
    %1239 = vmatpush1.msra.mxu0 %v346
    %1240 = vmatprep.subr.mxu0 %v349
    %1241 = vmatpush1.msra.mxu0 %v348
    %1242 = vmatprep.subr.mxu0 %v351
    %1243 = vmatpush1.msra.mxu0 %v350
    %1244 = vmatprep.subr.mxu0 %v353
    %1245 = vmatpush1.msra.mxu0 %v352
    %1246 = vmatprep.subr.mxu0 %v355
    %1247 = vmatpush1.msra.mxu0 %v354
    %1248 = vmatprep.subr.mxu0 %v357
    %1249 = vmatpush1.msra.mxu0 %v356
    %1250 = vmatprep.subr.mxu0 %v359
    %1251 = vmatpush1.msra.mxu0 %v358
    %1252 = vmatprep.subr.mxu0 %v361
    %1253 = vmatpush1.msra.mxu0 %v360
    %1254 = vmatprep.subr.mxu0 %v363
    %1255 = vmatpush1.msra.mxu0 %v362
    %1256 = vmatprep.subr.mxu0 %v365
    %1257 = vmatpush1.msra.mxu0 %v364
    %1258 = vmatprep.subr.mxu0 0.0
    %1259 = vmatpush1.msra.mxu0 0.0
    %1260 = vmatprep.subr.mxu0 0.0
    %1261 = vmatpush1.msra.mxu0 0.0
    %1262 = vmatprep.subr.mxu0 0.0
    %1263 = vmatpush1.msra.mxu0 0.0
    %1264 = vmatprep.subr.mxu0 0.0
    %1265 = vmatpush1.msra.mxu0 0.0
    %1266 = vmatprep.subr.mxu0 0.0
    %1267 = vmatpush1.msra.mxu0 0.0
    %1268 = vmatprep.subr.mxu0 0.0
    %1269 = vmatpush1.msra.mxu0 0.0
    %1270 = vmatprep.subr.mxu0 0.0
    %1271 = vmatpush1.msra.mxu0 0.0
    %1272 = vmatprep.subr.mxu0 0.0
    %1273 = vmatpush1.msra.mxu0 0.0
    %1274 = vmatprep.subr.mxu0 0.0
    %1275 = vmatpush1.msra.mxu0 0.0
    %1276 = vmatprep.subr.mxu0 0.0
    %1277 = vmatpush1.msra.mxu0 0.0
    %1278 = vmatprep.subr.mxu0 0.0
    %1279 = vmatpush1.msra.mxu0 0.0
    %1280 = vmatprep.subr.mxu0 0.0
    %1281 = vmatpush1.msra.mxu0 0.0
    %1282 = vmatprep.subr.mxu0 0.0
    %1283 = vmatpush1.msra.mxu0 0.0
    %1284 = vmatprep.subr.mxu0 0.0
    %1285 = vmatpush1.msra.mxu0 0.0
    %1286 = vmatprep.subr.mxu0 0.0
    %1287 = vmatpush1.msra.mxu0 0.0
    %1288 = vmatprep.subr.mxu0 0.0
    %1289 = vmatpush1.msra.mxu0 0.0
    %1290 = vmatprep.mubr.f32.mxu0 0.0
    %1291 = vmatmul.mubr.f32.gmra.mrb[0].mxu0 %v1223
    %v1292 = vpop.f32.mrb[0].mxu0
    %v1293 = vadd.f32 0.0, %v1292
    %v1294 = vpop.f32.mrb[0].mxu0
    %v1295 = vadd.f32 0.0, %v1294
    %1296 = vdwg.mxu0
    %v1297 = vadd.f32 %v1224, %v1293
    %v1298 = vadd.f32 %v1225, %v1295
    %v1299 = vxor.u32 %v1297, 2147483648
    %v1300 = vmul.f32 %v1299, 1.442695
    %v1301 = vpow.pop %v1300
    %v1302 = vadd.f32 %v1301, 1.0
    %v1303 = vrcp.pop %v1302
    %v1304 = vmul.f32 1.0, %v1303
    %v1305 = vmax.f32 %v1298, 0.0
    %v1306 = vsub.f32 1.0, %v1304
    %v1307 = vmul.f32 %v1306, %v1223
    %v1308 = vmul.f32 %v1304, %v1305
    %v1309 = vadd.f32 %v1307, %v1308
    %v1310 = vld [vmem:[#allocation3 + $0xb0] sm:$0xff]
    %v1311 = vld [vmem:[#allocation3 + $0xb8] sm:$0xff]
    %1312 = vmatprep.subr.mxu0 %v335
    %1313 = vmatpush1.msra.mxu0 %v334
    %1314 = vmatprep.subr.mxu0 %v337
    %1315 = vmatpush1.msra.mxu0 %v336
    %1316 = vmatprep.subr.mxu0 %v339
    %1317 = vmatpush1.msra.mxu0 %v338
    %1318 = vmatprep.subr.mxu0 %v341
    %1319 = vmatpush1.msra.mxu0 %v340
    %1320 = vmatprep.subr.mxu0 %v343
    %1321 = vmatpush1.msra.mxu0 %v342
    %1322 = vmatprep.subr.mxu0 %v345
    %1323 = vmatpush1.msra.mxu0 %v344
    %1324 = vmatprep.subr.mxu0 %v347
    %1325 = vmatpush1.msra.mxu0 %v346
    %1326 = vmatprep.subr.mxu0 %v349
    %1327 = vmatpush1.msra.mxu0 %v348
    %1328 = vmatprep.subr.mxu0 %v351
    %1329 = vmatpush1.msra.mxu0 %v350
    %1330 = vmatprep.subr.mxu0 %v353
    %1331 = vmatpush1.msra.mxu0 %v352
    %1332 = vmatprep.subr.mxu0 %v355
    %1333 = vmatpush1.msra.mxu0 %v354
    %1334 = vmatprep.subr.mxu0 %v357
    %1335 = vmatpush1.msra.mxu0 %v356
    %1336 = vmatprep.subr.mxu0 %v359
    %1337 = vmatpush1.msra.mxu0 %v358
    %1338 = vmatprep.subr.mxu0 %v361
    %1339 = vmatpush1.msra.mxu0 %v360
    %1340 = vmatprep.subr.mxu0 %v363
    %1341 = vmatpush1.msra.mxu0 %v362
    %1342 = vmatprep.subr.mxu0 %v365
    %1343 = vmatpush1.msra.mxu0 %v364
    %1344 = vmatprep.subr.mxu0 0.0
    %1345 = vmatpush1.msra.mxu0 0.0
    %1346 = vmatprep.subr.mxu0 0.0
    %1347 = vmatpush1.msra.mxu0 0.0
    %1348 = vmatprep.subr.mxu0 0.0
    %1349 = vmatpush1.msra.mxu0 0.0
    %1350 = vmatprep.subr.mxu0 0.0
    %1351 = vmatpush1.msra.mxu0 0.0
    %1352 = vmatprep.subr.mxu0 0.0
    %1353 = vmatpush1.msra.mxu0 0.0
    %1354 = vmatprep.subr.mxu0 0.0
    %1355 = vmatpush1.msra.mxu0 0.0
    %1356 = vmatprep.subr.mxu0 0.0
    %1357 = vmatpush1.msra.mxu0 0.0
    %1358 = vmatprep.subr.mxu0 0.0
    %1359 = vmatpush1.msra.mxu0 0.0
    %1360 = vmatprep.subr.mxu0 0.0
    %1361 = vmatpush1.msra.mxu0 0.0
    %1362 = vmatprep.subr.mxu0 0.0
    %1363 = vmatpush1.msra.mxu0 0.0
    %1364 = vmatprep.subr.mxu0 0.0
    %1365 = vmatpush1.msra.mxu0 0.0
    %1366 = vmatprep.subr.mxu0 0.0
    %1367 = vmatpush1.msra.mxu0 0.0
    %1368 = vmatprep.subr.mxu0 0.0
    %1369 = vmatpush1.msra.mxu0 0.0
    %1370 = vmatprep.subr.mxu0 0.0
    %1371 = vmatpush1.msra.mxu0 0.0
    %1372 = vmatprep.subr.mxu0 0.0
    %1373 = vmatpush1.msra.mxu0 0.0
    %1374 = vmatprep.subr.mxu0 0.0
    %1375 = vmatpush1.msra.mxu0 0.0
    %1376 = vmatprep.mubr.f32.mxu0 0.0
    %1377 = vmatmul.mubr.f32.gmra.mrb[0].mxu0 %v1309
    %v1378 = vpop.f32.mrb[0].mxu0
    %v1379 = vadd.f32 0.0, %v1378
    %v1380 = vpop.f32.mrb[0].mxu0
    %v1381 = vadd.f32 0.0, %v1380
    %1382 = vdwg.mxu0
    %v1383 = vadd.f32 %v1310, %v1379
    %v1384 = vadd.f32 %v1311, %v1381
    %v1385 = vxor.u32 %v1383, 2147483648
    %v1386 = vmul.f32 %v1385, 1.442695
    %v1387 = vpow.pop %v1386
    %v1388 = vadd.f32 %v1387, 1.0
    %v1389 = vrcp.pop %v1388
    %v1390 = vmul.f32 1.0, %v1389
    %v1391 = vmax.f32 %v1384, 0.0
    %v1392 = vsub.f32 1.0, %v1390
    %v1393 = vmul.f32 %v1392, %v1309
    %v1394 = vmul.f32 %v1390, %v1391
    %v1395 = vadd.f32 %v1393, %v1394
    %v1396 = vld [vmem:[#allocation3 + $0xc0] sm:$0xff]
    %v1397 = vld [vmem:[#allocation3 + $0xc8] sm:$0xff]
    %1398 = vmatprep.subr.mxu0 %v335
    %1399 = vmatpush1.msra.mxu0 %v334
    %1400 = vmatprep.subr.mxu0 %v337
    %1401 = vmatpush1.msra.mxu0 %v336
    %1402 = vmatprep.subr.mxu0 %v339
    %1403 = vmatpush1.msra.mxu0 %v338
    %1404 = vmatprep.subr.mxu0 %v341
    %1405 = vmatpush1.msra.mxu0 %v340
    %1406 = vmatprep.subr.mxu0 %v343
    %1407 = vmatpush1.msra.mxu0 %v342
    %1408 = vmatprep.subr.mxu0 %v345
    %1409 = vmatpush1.msra.mxu0 %v344
    %1410 = vmatprep.subr.mxu0 %v347
    %1411 = vmatpush1.msra.mxu0 %v346
    %1412 = vmatprep.subr.mxu0 %v349
    %1413 = vmatpush1.msra.mxu0 %v348
    %1414 = vmatprep.subr.mxu0 %v351
    %1415 = vmatpush1.msra.mxu0 %v350
    %1416 = vmatprep.subr.mxu0 %v353
    %1417 = vmatpush1.msra.mxu0 %v352
    %1418 = vmatprep.subr.mxu0 %v355
    %1419 = vmatpush1.msra.mxu0 %v354
    %1420 = vmatprep.subr.mxu0 %v357
    %1421 = vmatpush1.msra.mxu0 %v356
    %1422 = vmatprep.subr.mxu0 %v359
    %1423 = vmatpush1.msra.mxu0 %v358
    %1424 = vmatprep.subr.mxu0 %v361
    %1425 = vmatpush1.msra.mxu0 %v360
    %1426 = vmatprep.subr.mxu0 %v363
    %1427 = vmatpush1.msra.mxu0 %v362
    %1428 = vmatprep.subr.mxu0 %v365
    %1429 = vmatpush1.msra.mxu0 %v364
    %1430 = vmatprep.subr.mxu0 0.0
    %1431 = vmatpush1.msra.mxu0 0.0
    %1432 = vmatprep.subr.mxu0 0.0
    %1433 = vmatpush1.msra.mxu0 0.0
    %1434 = vmatprep.subr.mxu0 0.0
    %1435 = vmatpush1.msra.mxu0 0.0
    %1436 = vmatprep.subr.mxu0 0.0
    %1437 = vmatpush1.msra.mxu0 0.0
    %1438 = vmatprep.subr.mxu0 0.0
    %1439 = vmatpush1.msra.mxu0 0.0
    %1440 = vmatprep.subr.mxu0 0.0
    %1441 = vmatpush1.msra.mxu0 0.0
    %1442 = vmatprep.subr.mxu0 0.0
    %1443 = vmatpush1.msra.mxu0 0.0
    %1444 = vmatprep.subr.mxu0 0.0
    %1445 = vmatpush1.msra.mxu0 0.0
    %1446 = vmatprep.subr.mxu0 0.0
    %1447 = vmatpush1.msra.mxu0 0.0
    %1448 = vmatprep.subr.mxu0 0.0
    %1449 = vmatpush1.msra.mxu0 0.0
    %1450 = vmatprep.subr.mxu0 0.0
    %1451 = vmatpush1.msra.mxu0 0.0
    %1452 = vmatprep.subr.mxu0 0.0
    %1453 = vmatpush1.msra.mxu0 0.0
    %1454 = vmatprep.subr.mxu0 0.0
    %1455 = vmatpush1.msra.mxu0 0.0
    %1456 = vmatprep.subr.mxu0 0.0
    %1457 = vmatpush1.msra.mxu0 0.0
    %1458 = vmatprep.subr.mxu0 0.0
    %1459 = vmatpush1.msra.mxu0 0.0
    %1460 = vmatprep.subr.mxu0 0.0
    %1461 = vmatpush1.msra.mxu0 0.0
    %1462 = vmatprep.mubr.f32.mxu0 0.0
    %1463 = vmatmul.mubr.f32.gmra.mrb[0].mxu0 %v1395
    %v1464 = vpop.f32.mrb[0].mxu0
    %v1465 = vadd.f32 0.0, %v1464
    %v1466 = vpop.f32.mrb[0].mxu0
    %v1467 = vadd.f32 0.0, %v1466
    %1468 = vdwg.mxu0
    %v1469 = vadd.f32 %v1396, %v1465
    %v1470 = vadd.f32 %v1397, %v1467
    %v1471 = vxor.u32 %v1469, 2147483648
    %v1472 = vmul.f32 %v1471, 1.442695
    %v1473 = vpow.pop %v1472
    %v1474 = vadd.f32 %v1473, 1.0
    %v1475 = vrcp.pop %v1474
    %v1476 = vmul.f32 1.0, %v1475
    %v1477 = vmax.f32 %v1470, 0.0
    %v1478 = vsub.f32 1.0, %v1476
    %v1479 = vmul.f32 %v1478, %v1395
    %v1480 = vmul.f32 %v1476, %v1477
    %v1481 = vadd.f32 %v1479, %v1480
    %v1482 = vld [vmem:[#allocation3 + $0xd0] sm:$0xff]
    %v1483 = vld [vmem:[#allocation3 + $0xd8] sm:$0xff]
    %1484 = vmatprep.subr.mxu0 %v335
    %1485 = vmatpush1.msra.mxu0 %v334
    %1486 = vmatprep.subr.mxu0 %v337
    %1487 = vmatpush1.msra.mxu0 %v336
    %1488 = vmatprep.subr.mxu0 %v339
    %1489 = vmatpush1.msra.mxu0 %v338
    %1490 = vmatprep.subr.mxu0 %v341
    %1491 = vmatpush1.msra.mxu0 %v340
    %1492 = vmatprep.subr.mxu0 %v343
    %1493 = vmatpush1.msra.mxu0 %v342
    %1494 = vmatprep.subr.mxu0 %v345
    %1495 = vmatpush1.msra.mxu0 %v344
    %1496 = vmatprep.subr.mxu0 %v347
    %1497 = vmatpush1.msra.mxu0 %v346
    %1498 = vmatprep.subr.mxu0 %v349
    %1499 = vmatpush1.msra.mxu0 %v348
    %1500 = vmatprep.subr.mxu0 %v351
    %1501 = vmatpush1.msra.mxu0 %v350
    %1502 = vmatprep.subr.mxu0 %v353
    %1503 = vmatpush1.msra.mxu0 %v352
    %1504 = vmatprep.subr.mxu0 %v355
    %1505 = vmatpush1.msra.mxu0 %v354
    %1506 = vmatprep.subr.mxu0 %v357
    %1507 = vmatpush1.msra.mxu0 %v356
    %1508 = vmatprep.subr.mxu0 %v359
    %1509 = vmatpush1.msra.mxu0 %v358
    %1510 = vmatprep.subr.mxu0 %v361
    %1511 = vmatpush1.msra.mxu0 %v360
    %1512 = vmatprep.subr.mxu0 %v363
    %1513 = vmatpush1.msra.mxu0 %v362
    %1514 = vmatprep.subr.mxu0 %v365
    %1515 = vmatpush1.msra.mxu0 %v364
    %1516 = vmatprep.subr.mxu0 0.0
    %1517 = vmatpush1.msra.mxu0 0.0
    %1518 = vmatprep.subr.mxu0 0.0
    %1519 = vmatpush1.msra.mxu0 0.0
    %1520 = vmatprep.subr.mxu0 0.0
    %1521 = vmatpush1.msra.mxu0 0.0
    %1522 = vmatprep.subr.mxu0 0.0
    %1523 = vmatpush1.msra.mxu0 0.0
    %1524 = vmatprep.subr.mxu0 0.0
    %1525 = vmatpush1.msra.mxu0 0.0
    %1526 = vmatprep.subr.mxu0 0.0
    %1527 = vmatpush1.msra.mxu0 0.0
    %1528 = vmatprep.subr.mxu0 0.0
    %1529 = vmatpush1.msra.mxu0 0.0
    %1530 = vmatprep.subr.mxu0 0.0
    %1531 = vmatpush1.msra.mxu0 0.0
    %1532 = vmatprep.subr.mxu0 0.0
    %1533 = vmatpush1.msra.mxu0 0.0
    %1534 = vmatprep.subr.mxu0 0.0
    %1535 = vmatpush1.msra.mxu0 0.0
    %1536 = vmatprep.subr.mxu0 0.0
    %1537 = vmatpush1.msra.mxu0 0.0
    %1538 = vmatprep.subr.mxu0 0.0
    %1539 = vmatpush1.msra.mxu0 0.0
    %1540 = vmatprep.subr.mxu0 0.0
    %1541 = vmatpush1.msra.mxu0 0.0
    %1542 = vmatprep.subr.mxu0 0.0
    %1543 = vmatpush1.msra.mxu0 0.0
    %1544 = vmatprep.subr.mxu0 0.0
    %1545 = vmatpush1.msra.mxu0 0.0
    %1546 = vmatprep.subr.mxu0 0.0
    %1547 = vmatpush1.msra.mxu0 0.0
    %1548 = vmatprep.mubr.f32.mxu0 0.0
    %1549 = vmatmul.mubr.f32.gmra.mrb[0].mxu0 %v1481
    %v1550 = vpop.f32.mrb[0].mxu0
    %v1551 = vadd.f32 0.0, %v1550
    %v1552 = vpop.f32.mrb[0].mxu0
    %v1553 = vadd.f32 0.0, %v1552
    %1554 = vdwg.mxu0
    %v1555 = vadd.f32 %v1482, %v1551
    %v1556 = vadd.f32 %v1483, %v1553
    %v1557 = vxor.u32 %v1555, 2147483648
    %v1558 = vmul.f32 %v1557, 1.442695
    %v1559 = vpow.pop %v1558
    %v1560 = vadd.f32 %v1559, 1.0
    %v1561 = vrcp.pop %v1560
    %v1562 = vmul.f32 1.0, %v1561
    %v1563 = vmax.f32 %v1556, 0.0
    %v1564 = vsub.f32 1.0, %v1562
    %v1565 = vmul.f32 %v1564, %v1481
    %v1566 = vmul.f32 %v1562, %v1563
    %v1567 = vadd.f32 %v1565, %v1566
    %v1568 = vld [vmem:[#allocation3 + $0xe0] sm:$0xff]
    %v1569 = vld [vmem:[#allocation3 + $0xe8] sm:$0xff]
    %1570 = vmatprep.subr.mxu0 %v335
    %1571 = vmatpush1.msra.mxu0 %v334
    %1572 = vmatprep.subr.mxu0 %v337
    %1573 = vmatpush1.msra.mxu0 %v336
    %1574 = vmatprep.subr.mxu0 %v339
    %1575 = vmatpush1.msra.mxu0 %v338
    %1576 = vmatprep.subr.mxu0 %v341
    %1577 = vmatpush1.msra.mxu0 %v340
    %1578 = vmatprep.subr.mxu0 %v343
    %1579 = vmatpush1.msra.mxu0 %v342
    %1580 = vmatprep.subr.mxu0 %v345
    %1581 = vmatpush1.msra.mxu0 %v344
    %1582 = vmatprep.subr.mxu0 %v347
    %1583 = vmatpush1.msra.mxu0 %v346
    %1584 = vmatprep.subr.mxu0 %v349
    %1585 = vmatpush1.msra.mxu0 %v348
    %1586 = vmatprep.subr.mxu0 %v351
    %1587 = vmatpush1.msra.mxu0 %v350
    %1588 = vmatprep.subr.mxu0 %v353
    %1589 = vmatpush1.msra.mxu0 %v352
    %1590 = vmatprep.subr.mxu0 %v355
    %1591 = vmatpush1.msra.mxu0 %v354
    %1592 = vmatprep.subr.mxu0 %v357
    %1593 = vmatpush1.msra.mxu0 %v356
    %1594 = vmatprep.subr.mxu0 %v359
    %1595 = vmatpush1.msra.mxu0 %v358
    %1596 = vmatprep.subr.mxu0 %v361
    %1597 = vmatpush1.msra.mxu0 %v360
    %1598 = vmatprep.subr.mxu0 %v363
    %1599 = vmatpush1.msra.mxu0 %v362
    %1600 = vmatprep.subr.mxu0 %v365
    %1601 = vmatpush1.msra.mxu0 %v364
    %1602 = vmatprep.subr.mxu0 0.0
    %1603 = vmatpush1.msra.mxu0 0.0
    %1604 = vmatprep.subr.mxu0 0.0
    %1605 = vmatpush1.msra.mxu0 0.0
    %1606 = vmatprep.subr.mxu0 0.0
    %1607 = vmatpush1.msra.mxu0 0.0
    %1608 = vmatprep.subr.mxu0 0.0
    %1609 = vmatpush1.msra.mxu0 0.0
    %1610 = vmatprep.subr.mxu0 0.0
    %1611 = vmatpush1.msra.mxu0 0.0
    %1612 = vmatprep.subr.mxu0 0.0
    %1613 = vmatpush1.msra.mxu0 0.0
    %1614 = vmatprep.subr.mxu0 0.0
    %1615 = vmatpush1.msra.mxu0 0.0
    %1616 = vmatprep.subr.mxu0 0.0
    %1617 = vmatpush1.msra.mxu0 0.0
    %1618 = vmatprep.subr.mxu0 0.0
    %1619 = vmatpush1.msra.mxu0 0.0
    %1620 = vmatprep.subr.mxu0 0.0
    %1621 = vmatpush1.msra.mxu0 0.0
    %1622 = vmatprep.subr.mxu0 0.0
    %1623 = vmatpush1.msra.mxu0 0.0
    %1624 = vmatprep.subr.mxu0 0.0
    %1625 = vmatpush1.msra.mxu0 0.0
    %1626 = vmatprep.subr.mxu0 0.0
    %1627 = vmatpush1.msra.mxu0 0.0
    %1628 = vmatprep.subr.mxu0 0.0
    %1629 = vmatpush1.msra.mxu0 0.0
    %1630 = vmatprep.subr.mxu0 0.0
    %1631 = vmatpush1.msra.mxu0 0.0
    %1632 = vmatprep.subr.mxu0 0.0
    %1633 = vmatpush1.msra.mxu0 0.0
    %1634 = vmatprep.mubr.f32.mxu0 0.0
    %1635 = vmatmul.mubr.f32.gmra.mrb[0].mxu0 %v1567
    %v1636 = vpop.f32.mrb[0].mxu0
    %v1637 = vadd.f32 0.0, %v1636
    %v1638 = vpop.f32.mrb[0].mxu0
    %v1639 = vadd.f32 0.0, %v1638
    %1640 = vdwg.mxu0
    %v1641 = vadd.f32 %v1568, %v1637
    %v1642 = vadd.f32 %v1569, %v1639
    %v1643 = vxor.u32 %v1641, 2147483648
    %v1644 = vmul.f32 %v1643, 1.442695
    %v1645 = vpow.pop %v1644
    %v1646 = vadd.f32 %v1645, 1.0
    %v1647 = vrcp.pop %v1646
    %v1648 = vmul.f32 1.0, %v1647
    %v1649 = vmax.f32 %v1642, 0.0
    %v1650 = vsub.f32 1.0, %v1648
    %v1651 = vmul.f32 %v1650, %v1567
    %v1652 = vmul.f32 %v1648, %v1649
    %v1653 = vadd.f32 %v1651, %v1652
    %v1654 = vld [vmem:[#allocation3 + $0xf0] sm:$0xff]
    %v1655 = vld [vmem:[#allocation3 + $0xf8] sm:$0xff]
    %1656 = vmatprep.subr.mxu0 %v335
    %1657 = vmatpush1.msra.mxu0 %v334
    %1658 = vmatprep.subr.mxu0 %v337
    %1659 = vmatpush1.msra.mxu0 %v336
    %1660 = vmatprep.subr.mxu0 %v339
    %1661 = vmatpush1.msra.mxu0 %v338
    %1662 = vmatprep.subr.mxu0 %v341
    %1663 = vmatpush1.msra.mxu0 %v340
    %1664 = vmatprep.subr.mxu0 %v343
    %1665 = vmatpush1.msra.mxu0 %v342
    %1666 = vmatprep.subr.mxu0 %v345
    %1667 = vmatpush1.msra.mxu0 %v344
    %1668 = vmatprep.subr.mxu0 %v347
    %1669 = vmatpush1.msra.mxu0 %v346
    %1670 = vmatprep.subr.mxu0 %v349
    %1671 = vmatpush1.msra.mxu0 %v348
    %1672 = vmatprep.subr.mxu0 %v351
    %1673 = vmatpush1.msra.mxu0 %v350
    %1674 = vmatprep.subr.mxu0 %v353
    %1675 = vmatpush1.msra.mxu0 %v352
    %1676 = vmatprep.subr.mxu0 %v355
    %1677 = vmatpush1.msra.mxu0 %v354
    %1678 = vmatprep.subr.mxu0 %v357
    %1679 = vmatpush1.msra.mxu0 %v356
    %1680 = vmatprep.subr.mxu0 %v359
    %1681 = vmatpush1.msra.mxu0 %v358
    %1682 = vmatprep.subr.mxu0 %v361
    %1683 = vmatpush1.msra.mxu0 %v360
    %1684 = vmatprep.subr.mxu0 %v363
    %1685 = vmatpush1.msra.mxu0 %v362
    %1686 = vmatprep.subr.mxu0 %v365
    %1687 = vmatpush1.msra.mxu0 %v364
    %1688 = vmatprep.subr.mxu0 0.0
    %1689 = vmatpush1.msra.mxu0 0.0
    %1690 = vmatprep.subr.mxu0 0.0
    %1691 = vmatpush1.msra.mxu0 0.0
    %1692 = vmatprep.subr.mxu0 0.0
    %1693 = vmatpush1.msra.mxu0 0.0
    %1694 = vmatprep.subr.mxu0 0.0
    %1695 = vmatpush1.msra.mxu0 0.0
    %1696 = vmatprep.subr.mxu0 0.0
    %1697 = vmatpush1.msra.mxu0 0.0
    %1698 = vmatprep.subr.mxu0 0.0
    %1699 = vmatpush1.msra.mxu0 0.0
    %1700 = vmatprep.subr.mxu0 0.0
    %1701 = vmatpush1.msra.mxu0 0.0
    %1702 = vmatprep.subr.mxu0 0.0
    %1703 = vmatpush1.msra.mxu0 0.0
    %1704 = vmatprep.subr.mxu0 0.0
    %1705 = vmatpush1.msra.mxu0 0.0
    %1706 = vmatprep.subr.mxu0 0.0
    %1707 = vmatpush1.msra.mxu0 0.0
    %1708 = vmatprep.subr.mxu0 0.0
    %1709 = vmatpush1.msra.mxu0 0.0
    %1710 = vmatprep.subr.mxu0 0.0
    %1711 = vmatpush1.msra.mxu0 0.0
    %1712 = vmatprep.subr.mxu0 0.0
    %1713 = vmatpush1.msra.mxu0 0.0
    %1714 = vmatprep.subr.mxu0 0.0
    %1715 = vmatpush1.msra.mxu0 0.0
    %1716 = vmatprep.subr.mxu0 0.0
    %1717 = vmatpush1.msra.mxu0 0.0
    %1718 = vmatprep.subr.mxu0 0.0
    %1719 = vmatpush1.msra.mxu0 0.0
    %1720 = vmatprep.mubr.f32.mxu0 0.0
    %1721 = vmatmul.mubr.f32.gmra.mrb[0].mxu0 %v1653
    %v1722 = vpop.f32.mrb[0].mxu0
    %v1723 = vadd.f32 0.0, %v1722
    %v1724 = vpop.f32.mrb[0].mxu0
    %v1725 = vadd.f32 0.0, %v1724
    %1726 = vdwg.mxu0
    %v1727 = vadd.f32 %v1654, %v1723
    %v1728 = vadd.f32 %v1655, %v1725
    %v1729 = vxor.u32 %v1727, 2147483648
    %v1730 = vmul.f32 %v1729, 1.442695
    %v1731 = vpow.pop %v1730
    %v1732 = vadd.f32 %v1731, 1.0
    %v1733 = vrcp.pop %v1732
    %v1734 = vmul.f32 1.0, %v1733
    %v1735 = vmax.f32 %v1728, 0.0
    %v1736 = vsub.f32 1.0, %v1734
    %v1737 = vmul.f32 %v1736, %v1653
    %v1738 = vmul.f32 %v1734, %v1735
    %v1739 = vadd.f32 %v1737, %v1738
    %1740 = vst [vmem:[#allocation2] sm:$0xff] %v1739
    // Predicated region
    $region38: #{tpu_custom_call.1} parent=1 // pred_check
      %p1741 = pneg %p52
    $region39: #{tpu_custom_call.1} parent=1 // pred_check_branch
      %1743 = sbr.rel (%p1741) target = $region41
    $region40: #{tpu_custom_call.1} parent=1 // pred_region
      %v1744 = vld [vmem:[#allocation2] sm:$0xff]
      %v1745 = vld [vmem:[%s4] sm:$0xff]
      %v1746 = vld [vmem:[%s4 + $0x8] sm:$0xff]
      %v1747 = vld [vmem:[%s4 + $0x10] sm:$0xff]
      %v1748 = vld [vmem:[%s4 + $0x18] sm:$0xff]
      %v1749 = vld [vmem:[%s4 + $0x20] sm:$0xff]
      %v1750 = vld [vmem:[%s4 + $0x28] sm:$0xff]
      %v1751 = vld [vmem:[%s4 + $0x30] sm:$0xff]
      %v1752 = vld [vmem:[%s4 + $0x38] sm:$0xff]
      %v1753 = vld [vmem:[%s4 + $0x40] sm:$0xff]
      %v1754 = vld [vmem:[%s4 + $0x48] sm:$0xff]
      %v1755 = vld [vmem:[%s4 + $0x50] sm:$0xff]
      %v1756 = vld [vmem:[%s4 + $0x58] sm:$0xff]
      %v1757 = vld [vmem:[%s4 + $0x60] sm:$0xff]
      %v1758 = vld [vmem:[%s4 + $0x68] sm:$0xff]
      %v1759 = vld [vmem:[%s4 + $0x70] sm:$0xff]
      %v1760 = vld [vmem:[%s4 + $0x78] sm:$0xff]
      %v1761 = vld [vmem:[%s5] sm:$0x1]
      %v1763 = vlaneseq
      %v1764 = vshrl.u32 %v1763, 7
      %v1765 = vsub.s32 0, %v1764
      %v1766 = vrot.slane %v1761, %v1765
      %1768 = vmatprep.subr.mxu0 0.0
      %1769 = vmatpush1.msra.mxu0 %v1745
      %1770 = vmatprep.subr.mxu0 0.0
      %1771 = vmatpush1.msra.mxu0 %v1746
      %1772 = vmatprep.subr.mxu0 0.0
      %1773 = vmatpush1.msra.mxu0 %v1747
      %1774 = vmatprep.subr.mxu0 0.0
      %1775 = vmatpush1.msra.mxu0 %v1748
      %1776 = vmatprep.subr.mxu0 0.0
      %1777 = vmatpush1.msra.mxu0 %v1749
      %1778 = vmatprep.subr.mxu0 0.0
      %1779 = vmatpush1.msra.mxu0 %v1750
      %1780 = vmatprep.subr.mxu0 0.0
      %1781 = vmatpush1.msra.mxu0 %v1751
      %1782 = vmatprep.subr.mxu0 0.0
      %1783 = vmatpush1.msra.mxu0 %v1752
      %1784 = vmatprep.subr.mxu0 0.0
      %1785 = vmatpush1.msra.mxu0 %v1753
      %1786 = vmatprep.subr.mxu0 0.0
      %1787 = vmatpush1.msra.mxu0 %v1754
      %1788 = vmatprep.subr.mxu0 0.0
      %1789 = vmatpush1.msra.mxu0 %v1755
      %1790 = vmatprep.subr.mxu0 0.0
      %1791 = vmatpush1.msra.mxu0 %v1756
      %1792 = vmatprep.subr.mxu0 0.0
      %1793 = vmatpush1.msra.mxu0 %v1757
      %1794 = vmatprep.subr.mxu0 0.0
      %1795 = vmatpush1.msra.mxu0 %v1758
      %1796 = vmatprep.subr.mxu0 0.0
      %1797 = vmatpush1.msra.mxu0 %v1759
      %1798 = vmatprep.subr.mxu0 0.0
      %1799 = vmatpush1.msra.mxu0 %v1760
      %1800 = vmatprep.subr.mxu0 0.0
      %1801 = vmatpush1.msra.mxu0 0.0
      %1802 = vmatprep.subr.mxu0 0.0
      %1803 = vmatpush1.msra.mxu0 0.0
      %1804 = vmatprep.subr.mxu0 0.0
      %1805 = vmatpush1.msra.mxu0 0.0
      %1806 = vmatprep.subr.mxu0 0.0
      %1807 = vmatpush1.msra.mxu0 0.0
      %1808 = vmatprep.subr.mxu0 0.0
      %1809 = vmatpush1.msra.mxu0 0.0
      %1810 = vmatprep.subr.mxu0 0.0
      %1811 = vmatpush1.msra.mxu0 0.0
      %1812 = vmatprep.subr.mxu0 0.0
      %1813 = vmatpush1.msra.mxu0 0.0
      %1814 = vmatprep.subr.mxu0 0.0
      %1815 = vmatpush1.msra.mxu0 0.0
      %1816 = vmatprep.subr.mxu0 0.0
      %1817 = vmatpush1.msra.mxu0 0.0
      %1818 = vmatprep.subr.mxu0 0.0
      %1819 = vmatpush1.msra.mxu0 0.0
      %1820 = vmatprep.subr.mxu0 0.0
      %1821 = vmatpush1.msra.mxu0 0.0
      %1822 = vmatprep.subr.mxu0 0.0
      %1823 = vmatpush1.msra.mxu0 0.0
      %1824 = vmatprep.subr.mxu0 0.0
      %1825 = vmatpush1.msra.mxu0 0.0
      %1826 = vmatprep.subr.mxu0 0.0
      %1827 = vmatpush1.msra.mxu0 0.0
      %1828 = vmatprep.subr.mxu0 0.0
      %1829 = vmatpush1.msra.mxu0 0.0
      %1830 = vmatprep.subr.mxu0 0.0
      %1831 = vmatpush1.msra.mxu0 0.0
      %1832 = vmatprep.mubr.f32.mxu0 0.0
      %1833 = vmatmul.mubr.f32.gmra.mrb[0].mxu0 %v1744
      %v1834 = vpop.f32.mrb[0].mxu0
      %v1835 = vadd.f32 %v1766, %v1834
      %v1836 = vpop.f32.mrb[0].mxu0
      %1837 = vdwg.mxu0
      %vm1838 = vcmask 64512
      %1839 = vst.msk [vmem:[#allocation9] sm:$0xff] %vm1838, %v1835
    $region41: #{tpu_custom_call.1} parent=1 // pred_fallthru
      _
    // Predicated region
    $region42: #{tpu_custom_call.1} parent=1 // pred_check
      _
    $region43: #{tpu_custom_call.1} parent=1 // pred_check_branch
      %1841 = sbr.rel (0) target = $region45
    $region44: #{tpu_custom_call.1} parent=1 // pred_region
      %s1843 = ssub.s32 128, 128
      %1844 = vsyncadd [#allocation6], %s1843
      %s1846 = sshll.u32 [#allocation9], 4
      %s1847 = int_to_ptr.vmem [resolvable:$true] %s1846
      %1849 = dma.vmem_to_hbm [thread:$0]  %s1847, 128, %s6, [#allocation6]
    $region45: #{tpu_custom_call.1} parent=1 // pred_fallthru
      _
    // Predicated region
    $region46: #{tpu_custom_call.1} parent=1 // pred_check
      _
    $region47: #{tpu_custom_call.1} parent=1 // pred_check_branch
      %1851 = sbr.rel (0) target = $region49
    $region48: #{tpu_custom_call.1} parent=1 // pred_region
      %1852 = dma.done [#allocation6], 128
    $region49: #{tpu_custom_call.1} parent=1 // pred_fallthru
      _
    %1853 = vsyncpa [#allocation5], 1
    %1854 = vsyncpa [#allocation8], 1
    %1855 = vsyncpa [#allocation6], 1

</llo_original>
